<compile_context>
chip_gen: v7x
topology: tpu7x:2x2x1
jax: 0.10.0
libtpu: 0.0.40
codegen_flags: <defaults>
</compile_context>

<pallas_src>
import functools

import jax
import jax.numpy as jnp
import numpy as np
from jax.experimental import pallas as pl
from jax.experimental.pallas import tpu as pltpu

EPS = 1e-3      # matches nn.BatchNorm2d(eps=0.001)
LANES = 128
VMEM_LIMIT = 32 * 1024 * 1024  # explicit budget; safe on v5e/v6e/v7x


def _round_up(x, m):
    return (x + m - 1) // m * m


# --------------------------------------------------------------------------- #
# Kernel 1: implicit-GEMM conv (+ bias) and per-tile BN partial statistics.    #
# --------------------------------------------------------------------------- #
def _conv_stats_kernel(x_ref, w_ref, b_ref, y_ref, stats_ref, *,
                       KH, KW, SH, SW, Ho, Wo, C, Opad):
    # x_ref:     (1, Hp, Wp, C)   bf16  one padded NHWC image (this grid step's tile)
    # w_ref:     (KH*KW, C, Opad) bf16  weights, output channels zero-padded to 128
    # b_ref:     (1, Opad)        f32   conv bias (zero-padded)
    # y_ref:     (Ho*Wo, Opad)    f32   conv(+bias) output tile, lane-dense channels
    # stats_ref: (8, Opad)        f32   row 0 = sum(y), row 1 = sum(y*y), rest zero
    #
    # Layout-sensitive slicing/reshaping is done in f32 (robust relayouts); only
    # the MXU operands are cast to bf16.
    x = x_ref[0].astype(jnp.float32)                       # (Hp, Wp, C)

    acc = jnp.zeros((Ho * Wo, Opad), jnp.float32)
    for kh in range(KH):                                   # static unrolled 3x3
        for kw in range(KW):
            # TODO(synk): stride>1 uses strided lax.slice; only stride=(1,1) exercised here.
            win = x[kh:kh + SH * (Ho - 1) + 1:SH,
                    kw:kw + SW * (Wo - 1) + 1:SW, :]       # (Ho, Wo, C)
            lhs = win.reshape(Ho * Wo, C).astype(jnp.bfloat16)
            acc = acc + jnp.dot(lhs, w_ref[kh * KW + kw],
                                preferred_element_type=jnp.float32)

    y = acc + b_ref[...]                                   # broadcast (1, Opad)
    y_ref[...] = y

    # Single-pass BN partials (f32 accumulation): sum and sum of squares.
    s = jnp.sum(y, axis=0, keepdims=True)                  # (1, Opad)
    ss = jnp.sum(y * y, axis=0, keepdims=True)             # (1, Opad)
    stats_ref[...] = jnp.concatenate(
        [s, ss, jnp.zeros((6, Opad), jnp.float32)], axis=0)


# --------------------------------------------------------------------------- #
# Kernel 2: folded BatchNorm affine (scale/shift) + ReLU, lane-dense tiles.    #
# --------------------------------------------------------------------------- #
def _bn_relu_kernel(y_ref, scale_ref, shift_ref, o_ref):
    # y_ref: (tile_m, Opad) f32; scale/shift: (1, Opad) f32 (resident across grid)
    o_ref[...] = jnp.maximum(y_ref[...] * scale_ref[...] + shift_ref[...], 0.0)


# --------------------------------------------------------------------------- #
# Wrapper: conv -> BN(train batch stats) -> ReLU, matching the PyTorch block.  #
# --------------------------------------------------------------------------- #
def conv2d_bn_relu(x, weight, bias, gamma, beta, stride=(1, 1), padding=(0, 0),
                   channels_last_output=False):
    N, C, H, W = x.shape
    O, _, KH, KW = weight.shape
    SH, SW = stride
    PH, PW = padding
    Ho = (H + 2 * PH - KH) // SH + 1
    Wo = (W + 2 * PW - KW) // SW + 1
    M = N * Ho * Wo
    Opad = _round_up(O, LANES)          # lane-dense output channels
    tile_m = Ho * Wo                    # one image per M-tile (small shapes)
    # TODO(synk): for large images, tile rows of Ho with halo'd input blocks instead.

    # Layout glue: NCHW -> NHWC once, zero-pad spatially, bf16 MXU feed for x.
    x_nhwc = jnp.transpose(x.astype(jnp.float32), (0, 2, 3, 1))
    x_pad = jnp.pad(x_nhwc, ((0, 0), (PH, PH), (PW, PW), (0, 0))).astype(jnp.bfloat16)
    Hp, Wp = H + 2 * PH, W + 2 * PW

    # weight (O, C, KH, KW) -> (KH*KW, C, Opad), zero-padded channels, bf16.
    w = jnp.transpose(weight.astype(jnp.float32), (2, 3, 1, 0)).reshape(KH * KW, C, O)
    w = jnp.pad(w, ((0, 0), (0, 0), (0, Opad - O))).astype(jnp.bfloat16)
    b = jnp.pad(bias.astype(jnp.float32), (0, Opad - O)).reshape(1, Opad)

    kernel1 = functools.partial(_conv_stats_kernel, KH=KH, KW=KW, SH=SH, SW=SW,
                                Ho=Ho, Wo=Wo, C=C, Opad=Opad)
    flops = 2 * M * (C * KH * KW) * Opad
    bytes_accessed = (x_pad.size * 2 + w.size * 2 + b.size * 4
                      + M * Opad * 4 + N * 8 * Opad * 4)

    y, stats = pl.pallas_call(
        kernel1,
        out_shape=(jax.ShapeDtypeStruct((M, Opad), jnp.float32),
                   jax.ShapeDtypeStruct((N * 8, Opad), jnp.float32)),
        grid=(N,),
        in_specs=[
            pl.BlockSpec((1, Hp, Wp, C), lambda i: (i, 0, 0, 0)),       # per-image tile
            pl.BlockSpec((KH * KW, C, Opad), lambda i: (0, 0, 0)),      # resident
            pl.BlockSpec((1, Opad), lambda i: (0, 0)),                  # resident
        ],
        out_specs=(
            pl.BlockSpec((tile_m, Opad), lambda i: (i, 0)),
            pl.BlockSpec((8, Opad), lambda i: (i, 0)),
        ),
        compiler_params=pltpu.CompilerParams(
            dimension_semantics=("parallel",),
            vmem_limit_bytes=VMEM_LIMIT),
        cost_estimate=pl.CostEstimate(flops=flops, transcendentals=0,
                                      bytes_accessed=bytes_accessed),
    )(x_pad, w, b)

    # Combine per-tile partials (tiny): biased variance, training-mode BN, then
    # fold (gamma, beta, mean, var) into a single scale/shift per channel.
    stats = stats.reshape(N, 8, Opad)
    total_sum = jnp.sum(stats[:, 0, :], axis=0)
    total_ssq = jnp.sum(stats[:, 1, :], axis=0)
    mean = total_sum / M
    var = total_ssq / M - mean * mean
    gamma_p = jnp.pad(gamma.astype(jnp.float32), (0, Opad - O))
    beta_p = jnp.pad(beta.astype(jnp.float32), (0, Opad - O))
    scale_v = gamma_p * jax.lax.rsqrt(var + EPS)
    shift_v = beta_p - mean * scale_v
    scale = scale_v.reshape(1, Opad)
    shift = shift_v.reshape(1, Opad)

    out_flat = pl.pallas_call(
        _bn_relu_kernel,
        out_shape=jax.ShapeDtypeStruct((M, Opad), jnp.float32),
        grid=(M // tile_m,),
        in_specs=[
            pl.BlockSpec((tile_m, Opad), lambda i: (i, 0)),
            pl.BlockSpec((1, Opad), lambda i: (0, 0)),
            pl.BlockSpec((1, Opad), lambda i: (0, 0)),
        ],
        out_specs=pl.BlockSpec((tile_m, Opad), lambda i: (i, 0)),
        compiler_params=pltpu.CompilerParams(
            dimension_semantics=("parallel",),
            vmem_limit_bytes=VMEM_LIMIT),
    )(y, scale, shift)

    out_nhwc = out_flat[:, :O].reshape(N, Ho, Wo, O)
    if channels_last_output:
        return out_nhwc                     # natural TPU layout, no trailing transpose
    return jnp.transpose(out_nhwc, (0, 3, 1, 2))   # interface glue to match PyTorch NCHW


# --------------------------------------------------------------------------- #
# Pure-JAX reference (same bf16 MXU feed, f32 accumulation + f32 epilogue).    #
# --------------------------------------------------------------------------- #
def _reference(x, weight, bias, gamma, beta, stride, padding):
    y = jax.lax.conv_general_dilated(
        x.astype(jnp.bfloat16), weight.astype(jnp.bfloat16),
        window_strides=stride,
        padding=[(padding[0], padding[0]), (padding[1], padding[1])],
        dimension_numbers=("NCHW", "OIHW", "NCHW"),
        preferred_element_type=jnp.float32)
    y = y + bias.reshape(1, -1, 1, 1)
    mean = y.mean(axis=(0, 2, 3), keepdims=True)
    var = jnp.square(y - mean).mean(axis=(0, 2, 3), keepdims=True)   # biased var
    y = (y - mean) * jax.lax.rsqrt(var + EPS)
    y = y * gamma.reshape(1, -1, 1, 1) + beta.reshape(1, -1, 1, 1)
    return jnp.maximum(y, 0.0)


if __name__ == "__main__":
    # Conv2d(4 -> 8, k=3, padding=1, stride=1, bias=True) + BN(train) + ReLU
    N, C_in, H, W = 2, 4, 16, 16
    C_out, KH, KW = 8, 3, 3
    stride, padding = (1, 1), (1, 1)

    key = jax.random.PRNGKey(0)
    kx, kwt, kb, kg, kbt = jax.random.split(key, 5)
    x = jax.random.normal(kx, (N, C_in, H, W), dtype=jnp.float32)
    weight = jax.random.normal(kwt, (C_out, C_in, KH, KW), dtype=jnp.float32) * 0.1
    bias = jax.random.normal(kb, (C_out,), dtype=jnp.float32) * 0.1
    gamma = 1.0 + 0.1 * jax.random.normal(kg, (C_out,), dtype=jnp.float32)
    beta = 0.1 * jax.random.normal(kbt, (C_out,), dtype=jnp.float32)

    out = conv2d_bn_relu(x, weight, bias, gamma, beta, stride=stride, padding=padding)
    out = jax.block_until_ready(out)

    ref = _reference(x, weight, bias, gamma, beta, stride, padding)
    np.testing.assert_allclose(np.asarray(out), np.asarray(ref), rtol=1e-3, atol=1e-3)
    assert out.shape == (N, C_out, H, W)

    print("KERNEL_OK")
</pallas_src>

<mosaic_0001>
module attributes {stable_mosaic.version = 11 : i64} {
  func.func @_conv_stats_kernel(%arg0: i32, %arg1: memref<1x18x18x4xbf16, #tpu.memory_space<vmem>>, %arg2: memref<9x4x128xbf16, #tpu.memory_space<vmem>>, %arg3: memref<1x128xf32, #tpu.memory_space<vmem>>, %arg4: memref<256x128xf32, #tpu.memory_space<vmem>>, %arg5: memref<8x128xf32, #tpu.memory_space<vmem>>) attributes {dimension_semantics = [#tpu.dimension_semantics<parallel>], iteration_bounds = array<i64: 2>, scalar_prefetch = 0 : i64, scratch_operands = 0 : i64, tpu.core_type = #tpu.core_type<tc>, window_params = [{transform_indices = @transform_0, window_bounds = array<i64: 1, 18, 18, 4>}, {pipeline_mode = #tpu.pipeline_mode<synchronous>, transform_indices = @transform_1, window_bounds = array<i64: 9, 4, 128>}, {pipeline_mode = #tpu.pipeline_mode<synchronous>, transform_indices = @transform_2, window_bounds = array<i64: 1, 128>}, {transform_indices = @transform_3, window_bounds = array<i64: 256, 128>}, {transform_indices = @transform_4, window_bounds = array<i64: 8, 128>}]} {
    %c0 = arith.constant 0 : index
    %c0_0 = arith.constant 0 : index
    %c0_1 = arith.constant 0 : index
    %c0_2 = arith.constant 0 : index
    %0 = vector.load %arg1[%c0, %c0_0, %c0_1, %c0_2] : memref<1x18x18x4xbf16, #tpu.memory_space<vmem>>, vector<1x18x18x4xbf16>
    %1 = vector.shape_cast %0 : vector<1x18x18x4xbf16> to vector<18x18x4xbf16>
    %2 = arith.extf %1 : vector<18x18x4xbf16> to vector<18x18x4xf32>
    %cst = arith.constant 0.000000e+00 : f32
    %3 = vector.broadcast %cst : f32 to vector<256x128xf32>
    %4 = vector.extract_strided_slice %2 {offsets = [0, 0, 0], sizes = [16, 16, 4], strides = [1, 1, 1]} : vector<18x18x4xf32> to vector<16x16x4xf32>
    %5 = vector.shape_cast %4 : vector<16x16x4xf32> to vector<256x4xf32>
    %6 = arith.truncf %5 : vector<256x4xf32> to vector<256x4xbf16>
    %c0_3 = arith.constant 0 : index
    %c0_4 = arith.constant 0 : index
    %c0_5 = arith.constant 0 : index
    %7 = vector.load %arg2[%c0_3, %c0_4, %c0_5] : memref<9x4x128xbf16, #tpu.memory_space<vmem>>, vector<1x4x128xbf16>
    %8 = vector.shape_cast %7 : vector<1x4x128xbf16> to vector<4x128xbf16>
    %cst_6 = arith.constant dense<0.000000e+00> : vector<256x128xf32>
    %9 = tpu.matmul %6, %8, %cst_6 {dimension_numbers = #tpu.dot_dimension_numbers<[1], [0], [0], [1], [0, 0, 1, 1], [], []>} : vector<256x4xbf16>, vector<4x128xbf16>, vector<256x128xf32> -> vector<256x128xf32>
    %10 = arith.addf %3, %9 : vector<256x128xf32>
    %11 = vector.extract_strided_slice %2 {offsets = [0, 1, 0], sizes = [16, 16, 4], strides = [1, 1, 1]} : vector<18x18x4xf32> to vector<16x16x4xf32>
    %12 = vector.shape_cast %11 : vector<16x16x4xf32> to vector<256x4xf32>
    %13 = arith.truncf %12 : vector<256x4xf32> to vector<256x4xbf16>
    %c1 = arith.constant 1 : index
    %c0_7 = arith.constant 0 : index
    %c0_8 = arith.constant 0 : index
    %14 = vector.load %arg2[%c1, %c0_7, %c0_8] : memref<9x4x128xbf16, #tpu.memory_space<vmem>>, vector<1x4x128xbf16>
    %15 = vector.shape_cast %14 : vector<1x4x128xbf16> to vector<4x128xbf16>
    %cst_9 = arith.constant dense<0.000000e+00> : vector<256x128xf32>
    %16 = tpu.matmul %13, %15, %cst_9 {dimension_numbers = #tpu.dot_dimension_numbers<[1], [0], [0], [1], [0, 0, 1, 1], [], []>} : vector<256x4xbf16>, vector<4x128xbf16>, vector<256x128xf32> -> vector<256x128xf32>
    %17 = arith.addf %10, %16 : vector<256x128xf32>
    %18 = vector.extract_strided_slice %2 {offsets = [0, 2, 0], sizes = [16, 16, 4], strides = [1, 1, 1]} : vector<18x18x4xf32> to vector<16x16x4xf32>
    %19 = vector.shape_cast %18 : vector<16x16x4xf32> to vector<256x4xf32>
    %20 = arith.truncf %19 : vector<256x4xf32> to vector<256x4xbf16>
    %c2 = arith.constant 2 : index
    %c0_10 = arith.constant 0 : index
    %c0_11 = arith.constant 0 : index
    %21 = vector.load %arg2[%c2, %c0_10, %c0_11] : memref<9x4x128xbf16, #tpu.memory_space<vmem>>, vector<1x4x128xbf16>
    %22 = vector.shape_cast %21 : vector<1x4x128xbf16> to vector<4x128xbf16>
    %cst_12 = arith.constant dense<0.000000e+00> : vector<256x128xf32>
    %23 = tpu.matmul %20, %22, %cst_12 {dimension_numbers = #tpu.dot_dimension_numbers<[1], [0], [0], [1], [0, 0, 1, 1], [], []>} : vector<256x4xbf16>, vector<4x128xbf16>, vector<256x128xf32> -> vector<256x128xf32>
    %24 = arith.addf %17, %23 : vector<256x128xf32>
    %25 = vector.extract_strided_slice %2 {offsets = [1, 0, 0], sizes = [16, 16, 4], strides = [1, 1, 1]} : vector<18x18x4xf32> to vector<16x16x4xf32>
    %26 = vector.shape_cast %25 : vector<16x16x4xf32> to vector<256x4xf32>
    %27 = arith.truncf %26 : vector<256x4xf32> to vector<256x4xbf16>
    %c3 = arith.constant 3 : index
    %c0_13 = arith.constant 0 : index
    %c0_14 = arith.constant 0 : index
    %28 = vector.load %arg2[%c3, %c0_13, %c0_14] : memref<9x4x128xbf16, #tpu.memory_space<vmem>>, vector<1x4x128xbf16>
    %29 = vector.shape_cast %28 : vector<1x4x128xbf16> to vector<4x128xbf16>
    %cst_15 = arith.constant dense<0.000000e+00> : vector<256x128xf32>
    %30 = tpu.matmul %27, %29, %cst_15 {dimension_numbers = #tpu.dot_dimension_numbers<[1], [0], [0], [1], [0, 0, 1, 1], [], []>} : vector<256x4xbf16>, vector<4x128xbf16>, vector<256x128xf32> -> vector<256x128xf32>
    %31 = arith.addf %24, %30 : vector<256x128xf32>
    %32 = vector.extract_strided_slice %2 {offsets = [1, 1, 0], sizes = [16, 16, 4], strides = [1, 1, 1]} : vector<18x18x4xf32> to vector<16x16x4xf32>
    %33 = vector.shape_cast %32 : vector<16x16x4xf32> to vector<256x4xf32>
    %34 = arith.truncf %33 : vector<256x4xf32> to vector<256x4xbf16>
    %c4 = arith.constant 4 : index
    %c0_16 = arith.constant 0 : index
    %c0_17 = arith.constant 0 : index
    %35 = vector.load %arg2[%c4, %c0_16, %c0_17] : memref<9x4x128xbf16, #tpu.memory_space<vmem>>, vector<1x4x128xbf16>
    %36 = vector.shape_cast %35 : vector<1x4x128xbf16> to vector<4x128xbf16>
    %cst_18 = arith.constant dense<0.000000e+00> : vector<256x128xf32>
    %37 = tpu.matmul %34, %36, %cst_18 {dimension_numbers = #tpu.dot_dimension_numbers<[1], [0], [0], [1], [0, 0, 1, 1], [], []>} : vector<256x4xbf16>, vector<4x128xbf16>, vector<256x128xf32> -> vector<256x128xf32>
    %38 = arith.addf %31, %37 : vector<256x128xf32>
    %39 = vector.extract_strided_slice %2 {offsets = [1, 2, 0], sizes = [16, 16, 4], strides = [1, 1, 1]} : vector<18x18x4xf32> to vector<16x16x4xf32>
    %40 = vector.shape_cast %39 : vector<16x16x4xf32> to vector<256x4xf32>
    %41 = arith.truncf %40 : vector<256x4xf32> to vector<256x4xbf16>
    %c5 = arith.constant 5 : index
    %c0_19 = arith.constant 0 : index
    %c0_20 = arith.constant 0 : index
    %42 = vector.load %arg2[%c5, %c0_19, %c0_20] : memref<9x4x128xbf16, #tpu.memory_space<vmem>>, vector<1x4x128xbf16>
    %43 = vector.shape_cast %42 : vector<1x4x128xbf16> to vector<4x128xbf16>
    %cst_21 = arith.constant dense<0.000000e+00> : vector<256x128xf32>
    %44 = tpu.matmul %41, %43, %cst_21 {dimension_numbers = #tpu.dot_dimension_numbers<[1], [0], [0], [1], [0, 0, 1, 1], [], []>} : vector<256x4xbf16>, vector<4x128xbf16>, vector<256x128xf32> -> vector<256x128xf32>
    %45 = arith.addf %38, %44 : vector<256x128xf32>
    %46 = vector.extract_strided_slice %2 {offsets = [2, 0, 0], sizes = [16, 16, 4], strides = [1, 1, 1]} : vector<18x18x4xf32> to vector<16x16x4xf32>
    %47 = vector.shape_cast %46 : vector<16x16x4xf32> to vector<256x4xf32>
    %48 = arith.truncf %47 : vector<256x4xf32> to vector<256x4xbf16>
    %c6 = arith.constant 6 : index
    %c0_22 = arith.constant 0 : index
    %c0_23 = arith.constant 0 : index
    %49 = vector.load %arg2[%c6, %c0_22, %c0_23] : memref<9x4x128xbf16, #tpu.memory_space<vmem>>, vector<1x4x128xbf16>
    %50 = vector.shape_cast %49 : vector<1x4x128xbf16> to vector<4x128xbf16>
    %cst_24 = arith.constant dense<0.000000e+00> : vector<256x128xf32>
    %51 = tpu.matmul %48, %50, %cst_24 {dimension_numbers = #tpu.dot_dimension_numbers<[1], [0], [0], [1], [0, 0, 1, 1], [], []>} : vector<256x4xbf16>, vector<4x128xbf16>, vector<256x128xf32> -> vector<256x128xf32>
    %52 = arith.addf %45, %51 : vector<256x128xf32>
    %53 = vector.extract_strided_slice %2 {offsets = [2, 1, 0], sizes = [16, 16, 4], strides = [1, 1, 1]} : vector<18x18x4xf32> to vector<16x16x4xf32>
    %54 = vector.shape_cast %53 : vector<16x16x4xf32> to vector<256x4xf32>
    %55 = arith.truncf %54 : vector<256x4xf32> to vector<256x4xbf16>
    %c7 = arith.constant 7 : index
    %c0_25 = arith.constant 0 : index
    %c0_26 = arith.constant 0 : index
    %56 = vector.load %arg2[%c7, %c0_25, %c0_26] : memref<9x4x128xbf16, #tpu.memory_space<vmem>>, vector<1x4x128xbf16>
    %57 = vector.shape_cast %56 : vector<1x4x128xbf16> to vector<4x128xbf16>
    %cst_27 = arith.constant dense<0.000000e+00> : vector<256x128xf32>
    %58 = tpu.matmul %55, %57, %cst_27 {dimension_numbers = #tpu.dot_dimension_numbers<[1], [0], [0], [1], [0, 0, 1, 1], [], []>} : vector<256x4xbf16>, vector<4x128xbf16>, vector<256x128xf32> -> vector<256x128xf32>
    %59 = arith.addf %52, %58 : vector<256x128xf32>
    %60 = vector.extract_strided_slice %2 {offsets = [2, 2, 0], sizes = [16, 16, 4], strides = [1, 1, 1]} : vector<18x18x4xf32> to vector<16x16x4xf32>
    %61 = vector.shape_cast %60 : vector<16x16x4xf32> to vector<256x4xf32>
    %62 = arith.truncf %61 : vector<256x4xf32> to vector<256x4xbf16>
    %c8 = arith.constant 8 : index
    %c0_28 = arith.constant 0 : index
    %c0_29 = arith.constant 0 : index
    %63 = vector.load %arg2[%c8, %c0_28, %c0_29] : memref<9x4x128xbf16, #tpu.memory_space<vmem>>, vector<1x4x128xbf16>
    %64 = vector.shape_cast %63 : vector<1x4x128xbf16> to vector<4x128xbf16>
    %cst_30 = arith.constant dense<0.000000e+00> : vector<256x128xf32>
    %65 = tpu.matmul %62, %64, %cst_30 {dimension_numbers = #tpu.dot_dimension_numbers<[1], [0], [0], [1], [0, 0, 1, 1], [], []>} : vector<256x4xbf16>, vector<4x128xbf16>, vector<256x128xf32> -> vector<256x128xf32>
    %66 = arith.addf %59, %65 : vector<256x128xf32>
    %c0_31 = arith.constant 0 : index
    %c0_32 = arith.constant 0 : index
    %67 = vector.load %arg3[%c0_31, %c0_32] : memref<1x128xf32, #tpu.memory_space<vmem>>, vector<1x128xf32>
    %68 = vector.broadcast %67 : vector<1x128xf32> to vector<256x128xf32>
    %69 = arith.addf %66, %68 : vector<256x128xf32>
    %c0_33 = arith.constant 0 : index
    %c0_34 = arith.constant 0 : index
    %70 = vector.load %arg4[%c0_33, %c0_34] : memref<256x128xf32, #tpu.memory_space<vmem>>, vector<256x128xf32>
    tpu.vector_store %arg4[%c0_33, %c0_34], %69 {strides = array<i32>} : memref<256x128xf32, #tpu.memory_space<vmem>>, vector<256x128xf32>,
    %cst_35 = arith.constant dense<0.000000e+00> : vector<128xf32>
    %71 = vector.multi_reduction <add>, %69, %cst_35 [0] : vector<256x128xf32> to vector<128xf32>
    %72 = vector.shape_cast %71 : vector<128xf32> to vector<1x128xf32>
    %73 = arith.mulf %69, %69 : vector<256x128xf32>
    %cst_36 = arith.constant dense<0.000000e+00> : vector<128xf32>
    %74 = vector.multi_reduction <add>, %73, %cst_36 [0] : vector<256x128xf32> to vector<128xf32>
    %75 = vector.shape_cast %74 : vector<128xf32> to vector<1x128xf32>
    %cst_37 = arith.constant 0.000000e+00 : f32
    %76 = vector.broadcast %cst_37 : f32 to vector<6x128xf32>
    %77 = tpu.concatenate %72, %75, %76 in 0 : vector<1x128xf32>, vector<1x128xf32>, vector<6x128xf32> -> vector<8x128xf32>
    %c0_38 = arith.constant 0 : index
    %c0_39 = arith.constant 0 : index
    %78 = vector.load %arg5[%c0_38, %c0_39] : memref<8x128xf32, #tpu.memory_space<vmem>>, vector<8x128xf32>
    tpu.vector_store %arg5[%c0_38, %c0_39], %77 {strides = array<i32>} : memref<8x128xf32, #tpu.memory_space<vmem>>, vector<8x128xf32>,
    return
  }
  func.func @transform_0(%arg0: i32) -> (i32, i32, i32, i32) {
    %c0_i32 = arith.constant 0 : i32
    %c0_i32_0 = arith.constant 0 : i32
    %c0_i32_1 = arith.constant 0 : i32
    %c0_i32_2 = arith.constant 0 : i32
    return %arg0, %c0_i32, %c0_i32_0, %c0_i32_1 : i32, i32, i32, i32
  }
  func.func @transform_1(%arg0: i32) -> (i32, i32, i32) {
    %c0_i32 = arith.constant 0 : i32
    %c0_i32_0 = arith.constant 0 : i32
    %c0_i32_1 = arith.constant 0 : i32
    %c0_i32_2 = arith.constant 0 : i32
    return %c0_i32, %c0_i32_0, %c0_i32_1 : i32, i32, i32
  }
  func.func @transform_2(%arg0: i32) -> (i32, i32) {
    %c0_i32 = arith.constant 0 : i32
    %c0_i32_0 = arith.constant 0 : i32
    %c0_i32_1 = arith.constant 0 : i32
    return %c0_i32, %c0_i32_0 : i32, i32
  }
  func.func @transform_3(%arg0: i32) -> (i32, i32) {
    %c0_i32 = arith.constant 0 : i32
    %c0_i32_0 = arith.constant 0 : i32
    return %arg0, %c0_i32 : i32, i32
  }
  func.func @transform_4(%arg0: i32) -> (i32, i32) {
    %c0_i32 = arith.constant 0 : i32
    %c0_i32_0 = arith.constant 0 : i32
    return %arg0, %c0_i32 : i32, i32
  }
}

</mosaic_0001>

<llo_original>
// kernel: tpu_custom_call.1
$region0: #{tpu_custom_call.1}
  #allocation0 [shape = 'u32[]', space=smem, size = 0x4, offset = 0x4, fixed_abs, tag = 'smem constant byte address 0x4 - core index']
  #allocation1 [shape = 'u32[144,128]{1,0:T(1,128)}', space=vmem, size = 0x12000, scoped, tag = 'internal scratch']
  %s0 = inlined_call_operand.vmem [shape: bf16[2,18,18,4], index: 0, kind: input, shape index: {}]
  %s1 = inlined_call_operand.vmem [shape: bf16[9,4,128], index: 1, kind: input, shape index: {}]
  %s2 = inlined_call_operand.vmem [shape: f32[1,128], index: 2, kind: input, shape index: {}]
  %s3 = inlined_call_operand.hbm [shape: f32[512,128], index: 3, kind: output, shape index: {0}]
  %s4 = inlined_call_operand.hbm [shape: f32[16,128], index: 4, kind: output, shape index: {1}]
  %5 = xla_tuple %s3, %s4
  %s6 = sld [smem:[#allocation0]]
  $region53: #{tpu_custom_call.1} parent=0
    _
  %s8 = ssub.s32 1, %s6
  %s9 = scalar_select 0, %s8, %s6
  $region1: #{tpu_custom_call.1} parent=0
    #allocation2 [shape = 'u8[262144]{0}', space=vmem, size = 0x40000, scoped, tag = 'output window, operand 0']
    #allocation3 [shape = 's32[2]{0}', space=sflag, size = 0x8, scoped, tag = 'scoped memory for tpu_custom_call.1']
    #allocation4 [shape = 'u8[8192]{0}', space=vmem, size = 0x2000, scoped, tag = 'output window, operand 1']
    #allocation5 [shape = 's32[2]{0}', space=sflag, size = 0x8, scoped, tag = 'scoped memory for tpu_custom_call.1']
    %10 = vsyncpa [#allocation3], 0
    %s11 = scalar_lea.sflag [#allocation3], 1
    %12 = vsyncpa %s11, 0
    %13 = vsyncpa [#allocation5], 0
    %s14 = scalar_lea.sflag [#allocation5], 1
    %15 = vsyncpa %s14, 0
    loop: start=0, step=1, limit=4
    $region2: #{tpu_custom_call.1} parent=1 // loop_pre_header
      _
    $region3: #{tpu_custom_call.1} parent=1 // loop_header
      %s17 = sphi 0, %s21
      %p18 = scmp.ge.s32.totalorder %s17, 4
      %s27 = sphi 0, %s29
      %s30 = sphi 0, %s27
      %s31 = sphi 0, %s30
      %s47 = sphi 0, %s31
      %s51 = sphi 0, %s51
      %s53 = sphi 0, %s51
      %s54 = sphi 0, %s53
      %s68 = sphi 0, %s54
      %s72 = sphi 0, %s72
      %s74 = sphi 0, %s72
      %s75 = sphi 0, %s74
      %s89 = sphi 0, %s75
      %s95 = sphi 0, %s97
      %s98 = sphi 0, %s95
      %s99 = sphi 0, %s98
      %s115 = sphi 0, %s99
      %s121 = sphi 0, %s123
      %s124 = sphi 0, %s121
      %s125 = sphi 0, %s124
      %s141 = sphi 0, %s125
    $region4: #{tpu_custom_call.1} parent=1 // loop_header_branch
      %20 = sbr.rel (%p18) target = $region8
    $region5: #{tpu_custom_call.1} parent=1 // loop_body
      %s22 = ssub.s32 %s17, 1
      %s23 = ssub.s32 %s17, 2
      %s24 = sadd.s32 %s17, 1
      %s25 = ssub.s32 %s17, %s24
      %p26 = scmp.eq.s32.totalorder %s25, 0
      %s28 = sadd.s32 %s27, 1
      %s29 = scalar_select %p26, %s27, %s28
      %p32 = pneg %p26
      %p33 = scmp.eq.s32.totalorder %s17, 1
      %p34 = por %p32, %p33
      %p35 = scmp.ne.s32.totalorder %s27, %s30
      %p36 = scmp.eq.s32.totalorder %s17, 0
      %p37 = por %p35, %p36
      %p38 = scmp.ne.s32.totalorder %s27, %s30
      %p39 = scmp.eq.s32.totalorder %s22, 1
      %p40 = por %p38, %p39
      %p41 = scmp.ne.s32.totalorder %s30, %s31
      %p42 = scmp.eq.s32.totalorder %s22, 0
      %p43 = por %p41, %p42
      %p44 = scmp.ne.s32.totalorder %s30, %s31
      %p45 = scmp.eq.s32.totalorder %s23, 1
      %p46 = por %p44, %p45
      %p48 = scmp.ne.s32.totalorder %s31, %s47
      %p49 = scmp.eq.s32.totalorder %s23, 0
      %p50 = por %p48, %p49
      %s52 = sadd.s32 %s51, 1
      %p55 = scmp.eq.s32.totalorder %s17, 1
      %p56 = scmp.ne.s32.totalorder %s51, %s53
      %p57 = scmp.eq.s32.totalorder %s17, 0
      %p58 = por %p56, %p57
      %p59 = scmp.ne.s32.totalorder %s51, %s53
      %p60 = scmp.eq.s32.totalorder %s22, 1
      %p61 = por %p59, %p60
      %p62 = scmp.ne.s32.totalorder %s53, %s54
      %p63 = scmp.eq.s32.totalorder %s22, 0
      %p64 = por %p62, %p63
      %p65 = scmp.ne.s32.totalorder %s53, %s54
      %p66 = scmp.eq.s32.totalorder %s23, 1
      %p67 = por %p65, %p66
      %p69 = scmp.ne.s32.totalorder %s54, %s68
      %p70 = scmp.eq.s32.totalorder %s23, 0
      %p71 = por %p69, %p70
      %s73 = sadd.s32 %s72, 1
      %p76 = scmp.eq.s32.totalorder %s17, 1
      %p77 = scmp.ne.s32.totalorder %s72, %s74
      %p78 = scmp.eq.s32.totalorder %s17, 0
      %p79 = por %p77, %p78
      %p80 = scmp.ne.s32.totalorder %s72, %s74
      %p81 = scmp.eq.s32.totalorder %s22, 1
      %p82 = por %p80, %p81
      %p83 = scmp.ne.s32.totalorder %s74, %s75
      %p84 = scmp.eq.s32.totalorder %s22, 0
      %p85 = por %p83, %p84
      %p86 = scmp.ne.s32.totalorder %s74, %s75
      %p87 = scmp.eq.s32.totalorder %s23, 1
      %p88 = por %p86, %p87
      %p90 = scmp.ne.s32.totalorder %s75, %s89
      %p91 = scmp.eq.s32.totalorder %s23, 0
      %p92 = por %p90, %p91
      %s93 = ssub.s32 %s17, %s24
      %p94 = scmp.eq.s32.totalorder %s93, 0
      %s96 = sadd.s32 %s95, 1
      %s97 = scalar_select %p94, %s95, %s96
      %p100 = pneg %p94
      %p101 = scmp.eq.s32.totalorder %s17, 1
      %p102 = por %p100, %p101
      %p103 = scmp.ne.s32.totalorder %s95, %s98
      %p104 = scmp.eq.s32.totalorder %s17, 0
      %p105 = por %p103, %p104
      %p106 = scmp.ne.s32.totalorder %s95, %s98
      %p107 = scmp.eq.s32.totalorder %s22, 1
      %p108 = por %p106, %p107
      %p109 = scmp.ne.s32.totalorder %s98, %s99
      %p110 = scmp.eq.s32.totalorder %s22, 0
      %p111 = por %p109, %p110
      %p112 = scmp.ne.s32.totalorder %s98, %s99
      %p113 = scmp.eq.s32.totalorder %s23, 1
      %p114 = por %p112, %p113
      %p116 = scmp.ne.s32.totalorder %s99, %s115
      %p117 = scmp.eq.s32.totalorder %s23, 0
      %p118 = por %p116, %p117
      %s119 = ssub.s32 %s17, %s24
      %p120 = scmp.eq.s32.totalorder %s119, 0
      %s122 = sadd.s32 %s121, 1
      %s123 = scalar_select %p120, %s121, %s122
      %p126 = pneg %p120
      %p127 = scmp.eq.s32.totalorder %s17, 1
      %p128 = por %p126, %p127
      %p129 = scmp.ne.s32.totalorder %s121, %s124
      %p130 = scmp.eq.s32.totalorder %s17, 0
      %p131 = por %p129, %p130
      %p132 = scmp.ne.s32.totalorder %s121, %s124
      %p133 = scmp.eq.s32.totalorder %s22, 1
      %p134 = por %p132, %p133
      %p135 = scmp.ne.s32.totalorder %s124, %s125
      %p136 = scmp.eq.s32.totalorder %s22, 0
      %p137 = por %p135, %p136
      %p138 = scmp.ne.s32.totalorder %s124, %s125
      %p139 = scmp.eq.s32.totalorder %s23, 1
      %p140 = por %p138, %p139
      %p142 = scmp.ne.s32.totalorder %s125, %s141
      %p143 = scmp.eq.s32.totalorder %s23, 0
      %p144 = por %p142, %p143
      %p145 = scmp.le.s32.totalorder 1, %s17
      %p146 = scmp.lt.s32.totalorder %s17, 3
      %p147 = pnand %p145, %p146
      %p148 = pneg %p147
      // Predicated region
      $region9: #{tpu_custom_call.1} parent=5 // pred_check
        _
      $region10: #{tpu_custom_call.1} parent=5 // pred_check_branch
        %150 = sbr.rel (%p147) target = $region12
      $region11: #{tpu_custom_call.1} parent=5 // pred_region
        %s151 = ssub.s32 %s17, 1
        // Predicated region
        $region13: #{tpu_custom_call.1} parent=11 // pred_check
          %p152 = pneg %p64
        $region14: #{tpu_custom_call.1} parent=11 // pred_check_branch
          %154 = sbr.rel (%p152) target = $region16
        $region15: #{tpu_custom_call.1} parent=11 // pred_region
          _
        $region16: #{tpu_custom_call.1} parent=11 // pred_fallthru
          _
        // Predicated region
        $region17: #{tpu_custom_call.1} parent=11 // pred_check
          %p155 = pneg %p85
        $region18: #{tpu_custom_call.1} parent=11 // pred_check_branch
          %157 = sbr.rel (%p155) target = $region20
        $region19: #{tpu_custom_call.1} parent=11 // pred_region
          _
        $region20: #{tpu_custom_call.1} parent=11 // pred_fallthru
          _
      $region12: #{tpu_custom_call.1} parent=5 // pred_fallthru
        _
      %p158 = scmp.lt.s32.totalorder %s17, 2
      // Predicated region
      $region21: #{tpu_custom_call.1} parent=5 // pred_check
        %p159 = pneg %p158
      $region22: #{tpu_custom_call.1} parent=5 // pred_check_branch
        %161 = sbr.rel (%p159) target = $region24
      $region23: #{tpu_custom_call.1} parent=5 // pred_region
        // Predicated region
        $region25: #{tpu_custom_call.1} parent=23 // pred_check
          %p162 = pneg %p37
        $region26: #{tpu_custom_call.1} parent=23 // pred_check_branch
          %164 = sbr.rel (%p162) target = $region28
        $region27: #{tpu_custom_call.1} parent=23 // pred_region
          %p165 = scmp.lt.s32.totalorder %s17, 1
          %s166 = scalar_select %p165, %s17, 1
          %s167 = smul.addr %s166, 54
          %s168 = smul.addr %s167, 4
          %s169 = scalar_lea.vmem %s0, %s168
        $region28: #{tpu_custom_call.1} parent=23 // pred_fallthru
          _
      $region24: #{tpu_custom_call.1} parent=5 // pred_fallthru
        _
      %p170 = scmp.le.s32.totalorder 1, %s17
      %p171 = scmp.lt.s32.totalorder %s17, 3
      %p172 = pnand %p170, %p171
      %p173 = pneg %p172
      // Predicated region
      $region29: #{tpu_custom_call.1} parent=5 // pred_check
        _
      $region30: #{tpu_custom_call.1} parent=5 // pred_check_branch
        %175 = sbr.rel (%p172) target = $region32
      $region31: #{tpu_custom_call.1} parent=5 // pred_region
        %s176 = ssub.s32 %s17, 1
        %p177 = scmp.lt.s32.totalorder %s22, 1
        %s178 = scalar_select %p177, %s22, 1
        %s179 = smul.addr %s178, 54
        %s180 = smul.addr %s179, 4
        %s181 = scalar_lea.vmem %s0, %s180
        %p182 = pneg %p43
        %p183 = pneg %p40
        %p184 = pneg %p64
        %p185 = pneg %p61
        %p186 = pneg %p85
        %p187 = pneg %p82
        %p188 = pneg %p111
        %p189 = pneg %p108
        %s190 = sand.u32 %s98, 1
        %s191 = scalar_lea.sflag [#allocation3], %s190
        %s192 = sand.u32 %s98, 1
        %s193 = smul.addr %s192, 256
        %s194 = scalar_lea.vmem [#allocation2], %s193
        %p195 = pneg %p137
        %p196 = pneg %p134
        %s197 = sand.u32 %s124, 1
        %s198 = scalar_lea.sflag [#allocation5], %s197
        %s199 = sand.u32 %s124, 1
        %s200 = smul.addr %s199, 8
        %s201 = scalar_lea.vmem [#allocation4], %s200
        %p202 = scmp.lt.s32.totalorder %s22, 1
        %s203 = scalar_select %p202, %s22, 1
        %s204 = smul.addr %s203, 54
        %s205 = smul.addr %s204, 4
        %s206 = scalar_lea.vmem %s0, %s205
        %s207 = smul.u32 32, %s22
        %v209 = vld [vmem:[%s206] sm:$0xf]
        %v210 = vld [vmem:[%s206 + $0x4] sm:$0xf]
        %v211 = vld [vmem:[%s206 + $0x8] sm:$0x1]
        %v212 = vld [vmem:[%s206 + $0xc] sm:$0xf]
        %v213 = vld [vmem:[%s206 + $0x10] sm:$0xf]
        %v214 = vld [vmem:[%s206 + $0x14] sm:$0x1]
        %v215 = vld [vmem:[%s206 + $0x18] sm:$0xf]
        %v216 = vld [vmem:[%s206 + $0x1c] sm:$0xf]
        %v217 = vld [vmem:[%s206 + $0x20] sm:$0x1]
        %v218 = vld [vmem:[%s206 + $0x24] sm:$0xf]
        %v219 = vld [vmem:[%s206 + $0x28] sm:$0xf]
        %v220 = vld [vmem:[%s206 + $0x2c] sm:$0x1]
        %v221 = vld [vmem:[%s206 + $0x30] sm:$0xf]
        %v222 = vld [vmem:[%s206 + $0x34] sm:$0xf]
        %v223 = vld [vmem:[%s206 + $0x38] sm:$0x1]
        %v224 = vld [vmem:[%s206 + $0x3c] sm:$0xf]
        %v225 = vld [vmem:[%s206 + $0x40] sm:$0xf]
        %v226 = vld [vmem:[%s206 + $0x44] sm:$0x1]
        %v227 = vld [vmem:[%s206 + $0x48] sm:$0xf]
        %v228 = vld [vmem:[%s206 + $0x4c] sm:$0xf]
        %v229 = vld [vmem:[%s206 + $0x50] sm:$0x1]
        %v230 = vld [vmem:[%s206 + $0x54] sm:$0xf]
        %v231 = vld [vmem:[%s206 + $0x58] sm:$0xf]
        %v232 = vld [vmem:[%s206 + $0x5c] sm:$0x1]
        %v233 = vld [vmem:[%s206 + $0x60] sm:$0xf]
        %v234 = vld [vmem:[%s206 + $0x64] sm:$0xf]
        %v235 = vld [vmem:[%s206 + $0x68] sm:$0x1]
        %v236 = vld [vmem:[%s206 + $0x6c] sm:$0xf]
        %v237 = vld [vmem:[%s206 + $0x70] sm:$0xf]
        %v238 = vld [vmem:[%s206 + $0x74] sm:$0x1]
        %v239 = vld [vmem:[%s206 + $0x78] sm:$0xf]
        %v240 = vld [vmem:[%s206 + $0x7c] sm:$0xf]
        %v241 = vld [vmem:[%s206 + $0x80] sm:$0x1]
        %v242 = vld [vmem:[%s206 + $0x84] sm:$0xf]
        %v243 = vld [vmem:[%s206 + $0x88] sm:$0xf]
        %v244 = vld [vmem:[%s206 + $0x8c] sm:$0x1]
        %v245 = vld [vmem:[%s206 + $0x90] sm:$0xf]
        %v246 = vld [vmem:[%s206 + $0x94] sm:$0xf]
        %v247 = vld [vmem:[%s206 + $0x98] sm:$0x1]
        %v248 = vld [vmem:[%s206 + $0x9c] sm:$0xf]
        %v249 = vld [vmem:[%s206 + $0xa0] sm:$0xf]
        %v250 = vld [vmem:[%s206 + $0xa4] sm:$0x1]
        %v251 = vld [vmem:[%s206 + $0xa8] sm:$0xf]
        %v252 = vld [vmem:[%s206 + $0xac] sm:$0xf]
        %v253 = vld [vmem:[%s206 + $0xb0] sm:$0x1]
        %v254 = vld [vmem:[%s206 + $0xb4] sm:$0xf]
        %v255 = vld [vmem:[%s206 + $0xb8] sm:$0xf]
        %v256 = vld [vmem:[%s206 + $0xbc] sm:$0x1]
        %v257 = vld [vmem:[%s206 + $0xc0] sm:$0xf]
        %v258 = vld [vmem:[%s206 + $0xc4] sm:$0xf]
        %v259 = vld [vmem:[%s206 + $0xc8] sm:$0x1]
        %v260 = vld [vmem:[%s206 + $0xcc] sm:$0xf]
        %v261 = vld [vmem:[%s206 + $0xd0] sm:$0xf]
        %v262 = vld [vmem:[%s206 + $0xd4] sm:$0x1]
        %v263 = vunpack.c.l.bf16 %v209
        %v264 = vunpack.c.l.bf16 %v210
        %v265 = vunpack.c.l.bf16 %v211
        %v266 = vunpack.c.l.bf16 %v212
        %v267 = vunpack.c.l.bf16 %v213
        %v268 = vunpack.c.l.bf16 %v214
        %v269 = vunpack.c.l.bf16 %v215
        %v270 = vunpack.c.l.bf16 %v216
        %v271 = vunpack.c.l.bf16 %v217
        %v272 = vunpack.c.l.bf16 %v218
        %v273 = vunpack.c.l.bf16 %v219
        %v274 = vunpack.c.l.bf16 %v220
        %v275 = vunpack.c.l.bf16 %v221
        %v276 = vunpack.c.l.bf16 %v222
        %v277 = vunpack.c.l.bf16 %v223
        %v278 = vunpack.c.l.bf16 %v224
        %v279 = vunpack.c.l.bf16 %v225
        %v280 = vunpack.c.l.bf16 %v226
        %v281 = vunpack.c.l.bf16 %v227
        %v282 = vunpack.c.l.bf16 %v228
        %v283 = vunpack.c.l.bf16 %v229
        %v284 = vunpack.c.l.bf16 %v230
        %v285 = vunpack.c.l.bf16 %v231
        %v286 = vunpack.c.l.bf16 %v232
        %v287 = vunpack.c.l.bf16 %v233
        %v288 = vunpack.c.l.bf16 %v234
        %v289 = vunpack.c.l.bf16 %v235
        %v290 = vunpack.c.l.bf16 %v236
        %v291 = vunpack.c.l.bf16 %v237
        %v292 = vunpack.c.l.bf16 %v238
        %v293 = vunpack.c.l.bf16 %v239
        %v294 = vunpack.c.l.bf16 %v240
        %v295 = vunpack.c.l.bf16 %v241
        %v296 = vunpack.c.l.bf16 %v242
        %v297 = vunpack.c.l.bf16 %v243
        %v298 = vunpack.c.l.bf16 %v244
        %v299 = vunpack.c.l.bf16 %v245
        %v300 = vunpack.c.l.bf16 %v246
        %v301 = vunpack.c.l.bf16 %v247
        %v302 = vunpack.c.l.bf16 %v248
        %v303 = vunpack.c.l.bf16 %v249
        %v304 = vunpack.c.l.bf16 %v250
        %v305 = vunpack.c.l.bf16 %v251
        %v306 = vunpack.c.l.bf16 %v252
        %v307 = vunpack.c.l.bf16 %v253
        %v308 = vunpack.c.l.bf16 %v254
        %v309 = vunpack.c.l.bf16 %v255
        %v310 = vunpack.c.l.bf16 %v256
        %v311 = vunpack.c.l.bf16 %v257
        %v312 = vunpack.c.l.bf16 %v258
        %v313 = vunpack.c.l.bf16 %v259
        %v314 = vunpack.c.l.bf16 %v260
        %v315 = vunpack.c.l.bf16 %v261
        %v316 = vunpack.c.l.bf16 %v262
        %v317 = vpack.c.bf16 %v264, %v263
        %v318 = vpack.c.bf16 %v267, %v266
        %v319 = vpack.c.bf16 %v270, %v269
        %v320 = vpack.c.bf16 %v273, %v272
        %v321 = vpack.c.bf16 %v276, %v275
        %v322 = vpack.c.bf16 %v279, %v278
        %v323 = vpack.c.bf16 %v282, %v281
        %v324 = vpack.c.bf16 %v285, %v284
        %v325 = vpack.c.bf16 %v288, %v287
        %v326 = vpack.c.bf16 %v291, %v290
        %v327 = vpack.c.bf16 %v294, %v293
        %v328 = vpack.c.bf16 %v297, %v296
        %v329 = vpack.c.bf16 %v300, %v299
        %v330 = vpack.c.bf16 %v303, %v302
        %v331 = vpack.c.bf16 %v306, %v305
        %v332 = vpack.c.bf16 %v309, %v308
        %v333 = vld [vmem:[%s1] sm:$0x3]
        %vm382 = vcmask 1046528
        %v383 = vrot.slane %v263, 1
        %v384 = vrot.slane %v264, 1
        %v385 = vsel %vm382, %v383, %v384
        %v386 = vrot.slane %v265, 1
        %v387 = vsel %vm382, %v384, %v386
        %v388 = vrot.slane %v266, 1
        %v389 = vrot.slane %v267, 1
        %v390 = vsel %vm382, %v388, %v389
        %v391 = vrot.slane %v268, 1
        %v392 = vsel %vm382, %v389, %v391
        %v393 = vrot.slane %v269, 1
        %v394 = vrot.slane %v270, 1
        %v395 = vsel %vm382, %v393, %v394
        %v396 = vrot.slane %v271, 1
        %v397 = vsel %vm382, %v394, %v396
        %v398 = vrot.slane %v272, 1
        %v399 = vrot.slane %v273, 1
        %v400 = vsel %vm382, %v398, %v399
        %v401 = vrot.slane %v274, 1
        %v402 = vsel %vm382, %v399, %v401
        %v403 = vrot.slane %v275, 1
        %v404 = vrot.slane %v276, 1
        %v405 = vsel %vm382, %v403, %v404
        %v406 = vrot.slane %v277, 1
        %v407 = vsel %vm382, %v404, %v406
        %v408 = vrot.slane %v278, 1
        %v409 = vrot.slane %v279, 1
        %v410 = vsel %vm382, %v408, %v409
        %v411 = vrot.slane %v280, 1
        %v412 = vsel %vm382, %v409, %v411
        %v413 = vrot.slane %v281, 1
        %v414 = vrot.slane %v282, 1
        %v415 = vsel %vm382, %v413, %v414
        %v416 = vrot.slane %v283, 1
        %v417 = vsel %vm382, %v414, %v416
        %v418 = vrot.slane %v284, 1
        %v419 = vrot.slane %v285, 1
        %v420 = vsel %vm382, %v418, %v419
        %v421 = vrot.slane %v286, 1
        %v422 = vsel %vm382, %v419, %v421
        %v423 = vrot.slane %v287, 1
        %v424 = vrot.slane %v288, 1
        %v425 = vsel %vm382, %v423, %v424
        %v426 = vrot.slane %v289, 1
        %v427 = vsel %vm382, %v424, %v426
        %v428 = vrot.slane %v290, 1
        %v429 = vrot.slane %v291, 1
        %v430 = vsel %vm382, %v428, %v429
        %v431 = vrot.slane %v292, 1
        %v432 = vsel %vm382, %v429, %v431
        %v433 = vrot.slane %v293, 1
        %v434 = vrot.slane %v294, 1
        %v435 = vsel %vm382, %v433, %v434
        %v436 = vrot.slane %v295, 1
        %v437 = vsel %vm382, %v434, %v436
        %v438 = vrot.slane %v296, 1
        %v439 = vrot.slane %v297, 1
        %v440 = vsel %vm382, %v438, %v439
        %v441 = vrot.slane %v298, 1
        %v442 = vsel %vm382, %v439, %v441
        %v443 = vrot.slane %v299, 1
        %v444 = vrot.slane %v300, 1
        %v445 = vsel %vm382, %v443, %v444
        %v446 = vrot.slane %v301, 1
        %v447 = vsel %vm382, %v444, %v446
        %v448 = vrot.slane %v302, 1
        %v449 = vrot.slane %v303, 1
        %v450 = vsel %vm382, %v448, %v449
        %v451 = vrot.slane %v304, 1
        %v452 = vsel %vm382, %v449, %v451
        %v453 = vrot.slane %v305, 1
        %v454 = vrot.slane %v306, 1
        %v455 = vsel %vm382, %v453, %v454
        %v456 = vrot.slane %v307, 1
        %v457 = vsel %vm382, %v454, %v456
        %v458 = vrot.slane %v308, 1
        %v459 = vrot.slane %v309, 1
        %v460 = vsel %vm382, %v458, %v459
        %v461 = vrot.slane %v310, 1
        %v462 = vsel %vm382, %v459, %v461
        %v495 = vpack.c.bf16 %v387, %v385
        %v496 = vpack.c.bf16 %v392, %v390
        %v497 = vpack.c.bf16 %v397, %v395
        %v498 = vpack.c.bf16 %v402, %v400
        %v499 = vpack.c.bf16 %v407, %v405
        %v500 = vpack.c.bf16 %v412, %v410
        %v501 = vpack.c.bf16 %v417, %v415
        %v502 = vpack.c.bf16 %v422, %v420
        %v503 = vpack.c.bf16 %v427, %v425
        %v504 = vpack.c.bf16 %v432, %v430
        %v505 = vpack.c.bf16 %v437, %v435
        %v506 = vpack.c.bf16 %v442, %v440
        %v507 = vpack.c.bf16 %v447, %v445
        %v508 = vpack.c.bf16 %v452, %v450
        %v509 = vpack.c.bf16 %v457, %v455
        %v510 = vpack.c.bf16 %v462, %v460
        %s511 = scalar_lea.vmem %s1, 2
        %v512 = vld [vmem:[%s511] sm:$0x3]
        %vm513 = vcmask 31744
        %v515 = vsel %vm513, %v495, 0
        %v518 = vsel %vm513, %v496, 0
        %v521 = vsel %vm513, %v497, 0
        %v524 = vsel %vm513, %v498, 0
        %v527 = vsel %vm513, %v499, 0
        %v530 = vsel %vm513, %v500, 0
        %v533 = vsel %vm513, %v501, 0
        %v536 = vsel %vm513, %v502, 0
        %v539 = vsel %vm513, %v503, 0
        %v542 = vsel %vm513, %v504, 0
        %v545 = vsel %vm513, %v505, 0
        %v548 = vsel %vm513, %v506, 0
        %v551 = vsel %vm513, %v507, 0
        %v554 = vsel %vm513, %v508, 0
        %v557 = vsel %vm513, %v509, 0
        %v560 = vsel %vm513, %v510, 0
        %vm562 = vcmask 1041408
        %v564 = vsel %vm562, %v512, 0
        %566 = vmatprep.subr.bf16.mxu0 0
        %567 = vmatpush1.bf16.msra.mxu0 %v564
        %568 = vmatprep.subr.bf16.mxu0 0
        %569 = vmatpush1.bf16.msra.mxu0 0
        %570 = vmatprep.subr.bf16.mxu0 0
        %571 = vmatpush1.bf16.msra.mxu0 0
        %572 = vmatprep.subr.bf16.mxu0 0
        %573 = vmatpush1.bf16.msra.mxu0 0
        %574 = vmatprep.subr.bf16.mxu0 0
        %575 = vmatpush1.bf16.msra.mxu0 0
        %576 = vmatprep.subr.bf16.mxu0 0
        %577 = vmatpush1.bf16.msra.mxu0 0
        %578 = vmatprep.subr.bf16.mxu0 0
        %579 = vmatpush1.bf16.msra.mxu0 0
        %580 = vmatprep.subr.bf16.mxu0 0
        %581 = vmatpush1.bf16.msra.mxu0 0
        %582 = vmatprep.subr.bf16.mxu0 0
        %583 = vmatpush1.bf16.msra.mxu0 0
        %584 = vmatprep.subr.bf16.mxu0 0
        %585 = vmatpush1.bf16.msra.mxu0 0
        %586 = vmatprep.subr.bf16.mxu0 0
        %587 = vmatpush1.bf16.msra.mxu0 0
        %588 = vmatprep.subr.bf16.mxu0 0
        %589 = vmatpush1.bf16.msra.mxu0 0
        %590 = vmatprep.subr.bf16.mxu0 0
        %591 = vmatpush1.bf16.msra.mxu0 0
        %592 = vmatprep.subr.bf16.mxu0 0
        %593 = vmatpush1.bf16.msra.mxu0 0
        %594 = vmatprep.subr.bf16.mxu0 0
        %595 = vmatpush1.bf16.msra.mxu0 0
        %596 = vmatprep.subr.bf16.mxu0 0
        %597 = vmatpush1.bf16.msra.mxu0 0
        %598 = vmatprep.mubr.bf16.mxu0 0
        %599 = vmatmul.mubr.bf16.gmra.mrb[0].mxu0 %v515
        %v600 = vpop.f32.mrb[0].mxu0
        %v601 = vadd.f32 0.0, %v600
        %v602 = vpop.f32.mrb[0].mxu0
        %v603 = vpop.f32.mrb[0].mxu0
        %v604 = vadd.f32 0.0, %v603
        %v605 = vpop.f32.mrb[0].mxu0
        %606 = vmatprep.mubr.bf16.mxu0 0
        %607 = vmatmul.mubr.bf16.gmra.mrb[0].mxu0 %v518
        %v608 = vpop.f32.mrb[0].mxu0
        %v609 = vadd.f32 0.0, %v608
        %v610 = vpop.f32.mrb[0].mxu0
        %v611 = vpop.f32.mrb[0].mxu0
        %v612 = vadd.f32 0.0, %v611
        %v613 = vpop.f32.mrb[0].mxu0
        %614 = vmatprep.mubr.bf16.mxu0 0
        %615 = vmatmul.mubr.bf16.gmra.mrb[0].mxu0 %v521
        %v616 = vpop.f32.mrb[0].mxu0
        %v617 = vadd.f32 0.0, %v616
        %v618 = vpop.f32.mrb[0].mxu0
        %v619 = vpop.f32.mrb[0].mxu0
        %v620 = vadd.f32 0.0, %v619
        %v621 = vpop.f32.mrb[0].mxu0
        %622 = vmatprep.mubr.bf16.mxu0 0
        %623 = vmatmul.mubr.bf16.gmra.mrb[0].mxu0 %v524
        %v624 = vpop.f32.mrb[0].mxu0
        %v625 = vadd.f32 0.0, %v624
        %v626 = vpop.f32.mrb[0].mxu0
        %v627 = vpop.f32.mrb[0].mxu0
        %v628 = vadd.f32 0.0, %v627
        %v629 = vpop.f32.mrb[0].mxu0
        %630 = vmatprep.mubr.bf16.mxu0 0
        %631 = vmatmul.mubr.bf16.gmra.mrb[0].mxu0 %v527
        %v632 = vpop.f32.mrb[0].mxu0
        %v633 = vadd.f32 0.0, %v632
        %v634 = vpop.f32.mrb[0].mxu0
        %v635 = vpop.f32.mrb[0].mxu0
        %v636 = vadd.f32 0.0, %v635
        %v637 = vpop.f32.mrb[0].mxu0
        %638 = vmatprep.mubr.bf16.mxu0 0
        %639 = vmatmul.mubr.bf16.gmra.mrb[0].mxu0 %v530
        %v640 = vpop.f32.mrb[0].mxu0
        %v641 = vadd.f32 0.0, %v640
        %v642 = vpop.f32.mrb[0].mxu0
        %v643 = vpop.f32.mrb[0].mxu0
        %v644 = vadd.f32 0.0, %v643
        %v645 = vpop.f32.mrb[0].mxu0
        %646 = vmatprep.mubr.bf16.mxu0 0
        %647 = vmatmul.mubr.bf16.gmra.mrb[0].mxu0 %v533
        %v648 = vpop.f32.mrb[0].mxu0
        %v649 = vadd.f32 0.0, %v648
        %v650 = vpop.f32.mrb[0].mxu0
        %v651 = vpop.f32.mrb[0].mxu0
        %v652 = vadd.f32 0.0, %v651
        %v653 = vpop.f32.mrb[0].mxu0
        %654 = vmatprep.mubr.bf16.mxu0 0
        %655 = vmatmul.mubr.bf16.gmra.mrb[0].mxu0 %v536
        %v656 = vpop.f32.mrb[0].mxu0
        %v657 = vadd.f32 0.0, %v656
        %v658 = vpop.f32.mrb[0].mxu0
        %v659 = vpop.f32.mrb[0].mxu0
        %v660 = vadd.f32 0.0, %v659
        %v661 = vpop.f32.mrb[0].mxu0
        %662 = vmatprep.mubr.bf16.mxu0 0
        %663 = vmatmul.mubr.bf16.gmra.mrb[0].mxu0 %v539
        %v664 = vpop.f32.mrb[0].mxu0
        %v665 = vadd.f32 0.0, %v664
        %v666 = vpop.f32.mrb[0].mxu0
        %v667 = vpop.f32.mrb[0].mxu0
        %v668 = vadd.f32 0.0, %v667
        %v669 = vpop.f32.mrb[0].mxu0
        %670 = vmatprep.mubr.bf16.mxu0 0
        %671 = vmatmul.mubr.bf16.gmra.mrb[0].mxu0 %v542
        %v672 = vpop.f32.mrb[0].mxu0
        %v673 = vadd.f32 0.0, %v672
        %v674 = vpop.f32.mrb[0].mxu0
        %v675 = vpop.f32.mrb[0].mxu0
        %v676 = vadd.f32 0.0, %v675
        %v677 = vpop.f32.mrb[0].mxu0
        %678 = vmatprep.mubr.bf16.mxu0 0
        %679 = vmatmul.mubr.bf16.gmra.mrb[0].mxu0 %v545
        %v680 = vpop.f32.mrb[0].mxu0
        %v681 = vadd.f32 0.0, %v680
        %v682 = vpop.f32.mrb[0].mxu0
        %v683 = vpop.f32.mrb[0].mxu0
        %v684 = vadd.f32 0.0, %v683
        %v685 = vpop.f32.mrb[0].mxu0
        %686 = vmatprep.mubr.bf16.mxu0 0
        %687 = vmatmul.mubr.bf16.gmra.mrb[0].mxu0 %v548
        %v688 = vpop.f32.mrb[0].mxu0
        %v689 = vadd.f32 0.0, %v688
        %v690 = vpop.f32.mrb[0].mxu0
        %v691 = vpop.f32.mrb[0].mxu0
        %v692 = vadd.f32 0.0, %v691
        %v693 = vpop.f32.mrb[0].mxu0
        %694 = vmatprep.mubr.bf16.mxu0 0
        %695 = vmatmul.mubr.bf16.gmra.mrb[0].mxu0 %v551
        %v696 = vpop.f32.mrb[0].mxu0
        %v697 = vadd.f32 0.0, %v696
        %v698 = vpop.f32.mrb[0].mxu0
        %v699 = vpop.f32.mrb[0].mxu0
        %v700 = vadd.f32 0.0, %v699
        %v701 = vpop.f32.mrb[0].mxu0
        %702 = vmatprep.mubr.bf16.mxu0 0
        %703 = vmatmul.mubr.bf16.gmra.mrb[0].mxu0 %v554
        %v704 = vpop.f32.mrb[0].mxu0
        %v705 = vadd.f32 0.0, %v704
        %v706 = vpop.f32.mrb[0].mxu0
        %v707 = vpop.f32.mrb[0].mxu0
        %v708 = vadd.f32 0.0, %v707
        %v709 = vpop.f32.mrb[0].mxu0
        %710 = vmatprep.mubr.bf16.mxu0 0
        %711 = vmatmul.mubr.bf16.gmra.mrb[0].mxu0 %v557
        %v712 = vpop.f32.mrb[0].mxu0
        %v713 = vadd.f32 0.0, %v712
        %v714 = vpop.f32.mrb[0].mxu0
        %v715 = vpop.f32.mrb[0].mxu0
        %v716 = vadd.f32 0.0, %v715
        %v717 = vpop.f32.mrb[0].mxu0
        %718 = vmatprep.mubr.bf16.mxu0 0
        %719 = vmatmul.mubr.bf16.gmra.mrb[0].mxu0 %v560
        %v720 = vpop.f32.mrb[0].mxu0
        %v721 = vadd.f32 0.0, %v720
        %v722 = vpop.f32.mrb[0].mxu0
        %v723 = vpop.f32.mrb[0].mxu0
        %v724 = vadd.f32 0.0, %v723
        %v725 = vpop.f32.mrb[0].mxu0
        %726 = vdwg.mxu0
        %v728 = vsel %vm513, %v317, 0
        %v731 = vsel %vm513, %v318, 0
        %v734 = vsel %vm513, %v319, 0
        %v737 = vsel %vm513, %v320, 0
        %v740 = vsel %vm513, %v321, 0
        %v743 = vsel %vm513, %v322, 0
        %v746 = vsel %vm513, %v323, 0
        %v749 = vsel %vm513, %v324, 0
        %v752 = vsel %vm513, %v325, 0
        %v755 = vsel %vm513, %v326, 0
        %v758 = vsel %vm513, %v327, 0
        %v761 = vsel %vm513, %v328, 0
        %v764 = vsel %vm513, %v329, 0
        %v767 = vsel %vm513, %v330, 0
        %v770 = vsel %vm513, %v331, 0
        %v773 = vsel %vm513, %v332, 0
        %v776 = vsel %vm562, %v333, 0
        %778 = vmatprep.subr.bf16.mxu0 0
        %779 = vmatpush1.bf16.msra.mxu0 %v776
        %780 = vmatprep.subr.bf16.mxu0 0
        %781 = vmatpush1.bf16.msra.mxu0 0
        %782 = vmatprep.subr.bf16.mxu0 0
        %783 = vmatpush1.bf16.msra.mxu0 0
        %784 = vmatprep.subr.bf16.mxu0 0
        %785 = vmatpush1.bf16.msra.mxu0 0
        %786 = vmatprep.subr.bf16.mxu0 0
        %787 = vmatpush1.bf16.msra.mxu0 0
        %788 = vmatprep.subr.bf16.mxu0 0
        %789 = vmatpush1.bf16.msra.mxu0 0
        %790 = vmatprep.subr.bf16.mxu0 0
        %791 = vmatpush1.bf16.msra.mxu0 0
        %792 = vmatprep.subr.bf16.mxu0 0
        %793 = vmatpush1.bf16.msra.mxu0 0
        %794 = vmatprep.subr.bf16.mxu0 0
        %795 = vmatpush1.bf16.msra.mxu0 0
        %796 = vmatprep.subr.bf16.mxu0 0
        %797 = vmatpush1.bf16.msra.mxu0 0
        %798 = vmatprep.subr.bf16.mxu0 0
        %799 = vmatpush1.bf16.msra.mxu0 0
        %800 = vmatprep.subr.bf16.mxu0 0
        %801 = vmatpush1.bf16.msra.mxu0 0
        %802 = vmatprep.subr.bf16.mxu0 0
        %803 = vmatpush1.bf16.msra.mxu0 0
        %804 = vmatprep.subr.bf16.mxu0 0
        %805 = vmatpush1.bf16.msra.mxu0 0
        %806 = vmatprep.subr.bf16.mxu0 0
        %807 = vmatpush1.bf16.msra.mxu0 0
        %808 = vmatprep.subr.bf16.mxu0 0
        %809 = vmatpush1.bf16.msra.mxu0 0
        %810 = vmatprep.mubr.bf16.mxu0 0
        %811 = vmatmul.mubr.bf16.gmra.mrb[0].mxu0 %v728
        %v812 = vpop.f32.mrb[0].mxu0
        %v813 = vadd.f32 %v601, %v812
        %v814 = vpop.f32.mrb[0].mxu0
        %v815 = vpop.f32.mrb[0].mxu0
        %v816 = vadd.f32 %v604, %v815
        %v817 = vpop.f32.mrb[0].mxu0
        %818 = vmatprep.mubr.bf16.mxu0 0
        %819 = vmatmul.mubr.bf16.gmra.mrb[0].mxu0 %v731
        %v820 = vpop.f32.mrb[0].mxu0
        %v821 = vadd.f32 %v609, %v820
        %v822 = vpop.f32.mrb[0].mxu0
        %v823 = vpop.f32.mrb[0].mxu0
        %v824 = vadd.f32 %v612, %v823
        %v825 = vpop.f32.mrb[0].mxu0
        %826 = vmatprep.mubr.bf16.mxu0 0
        %827 = vmatmul.mubr.bf16.gmra.mrb[0].mxu0 %v734
        %v828 = vpop.f32.mrb[0].mxu0
        %v829 = vadd.f32 %v617, %v828
        %v830 = vpop.f32.mrb[0].mxu0
        %v831 = vpop.f32.mrb[0].mxu0
        %v832 = vadd.f32 %v620, %v831
        %v833 = vpop.f32.mrb[0].mxu0
        %834 = vmatprep.mubr.bf16.mxu0 0
        %835 = vmatmul.mubr.bf16.gmra.mrb[0].mxu0 %v737
        %v836 = vpop.f32.mrb[0].mxu0
        %v837 = vadd.f32 %v625, %v836
        %v838 = vpop.f32.mrb[0].mxu0
        %v839 = vpop.f32.mrb[0].mxu0
        %v840 = vadd.f32 %v628, %v839
        %v841 = vpop.f32.mrb[0].mxu0
        %842 = vmatprep.mubr.bf16.mxu0 0
        %843 = vmatmul.mubr.bf16.gmra.mrb[0].mxu0 %v740
        %v844 = vpop.f32.mrb[0].mxu0
        %v845 = vadd.f32 %v633, %v844
        %v846 = vpop.f32.mrb[0].mxu0
        %v847 = vpop.f32.mrb[0].mxu0
        %v848 = vadd.f32 %v636, %v847
        %v849 = vpop.f32.mrb[0].mxu0
        %850 = vmatprep.mubr.bf16.mxu0 0
        %851 = vmatmul.mubr.bf16.gmra.mrb[0].mxu0 %v743
        %v852 = vpop.f32.mrb[0].mxu0
        %v853 = vadd.f32 %v641, %v852
        %v854 = vpop.f32.mrb[0].mxu0
        %v855 = vpop.f32.mrb[0].mxu0
        %v856 = vadd.f32 %v644, %v855
        %v857 = vpop.f32.mrb[0].mxu0
        %858 = vmatprep.mubr.bf16.mxu0 0
        %859 = vmatmul.mubr.bf16.gmra.mrb[0].mxu0 %v746
        %v860 = vpop.f32.mrb[0].mxu0
        %v861 = vadd.f32 %v649, %v860
        %v862 = vpop.f32.mrb[0].mxu0
        %v863 = vpop.f32.mrb[0].mxu0
        %v864 = vadd.f32 %v652, %v863
        %v865 = vpop.f32.mrb[0].mxu0
        %866 = vmatprep.mubr.bf16.mxu0 0
        %867 = vmatmul.mubr.bf16.gmra.mrb[0].mxu0 %v749
        %v868 = vpop.f32.mrb[0].mxu0
        %v869 = vadd.f32 %v657, %v868
        %v870 = vpop.f32.mrb[0].mxu0
        %v871 = vpop.f32.mrb[0].mxu0
        %v872 = vadd.f32 %v660, %v871
        %v873 = vpop.f32.mrb[0].mxu0
        %874 = vmatprep.mubr.bf16.mxu0 0
        %875 = vmatmul.mubr.bf16.gmra.mrb[0].mxu0 %v752
        %v876 = vpop.f32.mrb[0].mxu0
        %v877 = vadd.f32 %v665, %v876
        %v878 = vpop.f32.mrb[0].mxu0
        %v879 = vpop.f32.mrb[0].mxu0
        %v880 = vadd.f32 %v668, %v879
        %v881 = vpop.f32.mrb[0].mxu0
        %882 = vmatprep.mubr.bf16.mxu0 0
        %883 = vmatmul.mubr.bf16.gmra.mrb[0].mxu0 %v755
        %v884 = vpop.f32.mrb[0].mxu0
        %v885 = vadd.f32 %v673, %v884
        %v886 = vpop.f32.mrb[0].mxu0
        %v887 = vpop.f32.mrb[0].mxu0
        %v888 = vadd.f32 %v676, %v887
        %v889 = vpop.f32.mrb[0].mxu0
        %890 = vmatprep.mubr.bf16.mxu0 0
        %891 = vmatmul.mubr.bf16.gmra.mrb[0].mxu0 %v758
        %v892 = vpop.f32.mrb[0].mxu0
        %v893 = vadd.f32 %v681, %v892
        %v894 = vpop.f32.mrb[0].mxu0
        %v895 = vpop.f32.mrb[0].mxu0
        %v896 = vadd.f32 %v684, %v895
        %v897 = vpop.f32.mrb[0].mxu0
        %898 = vmatprep.mubr.bf16.mxu0 0
        %899 = vmatmul.mubr.bf16.gmra.mrb[0].mxu0 %v761
        %v900 = vpop.f32.mrb[0].mxu0
        %v901 = vadd.f32 %v689, %v900
        %v902 = vpop.f32.mrb[0].mxu0
        %v903 = vpop.f32.mrb[0].mxu0
        %v904 = vadd.f32 %v692, %v903
        %v905 = vpop.f32.mrb[0].mxu0
        %906 = vmatprep.mubr.bf16.mxu0 0
        %907 = vmatmul.mubr.bf16.gmra.mrb[0].mxu0 %v764
        %v908 = vpop.f32.mrb[0].mxu0
        %v909 = vadd.f32 %v697, %v908
        %v910 = vpop.f32.mrb[0].mxu0
        %v911 = vpop.f32.mrb[0].mxu0
        %v912 = vadd.f32 %v700, %v911
        %v913 = vpop.f32.mrb[0].mxu0
        %914 = vmatprep.mubr.bf16.mxu0 0
        %915 = vmatmul.mubr.bf16.gmra.mrb[0].mxu0 %v767
        %v916 = vpop.f32.mrb[0].mxu0
        %v917 = vadd.f32 %v705, %v916
        %v918 = vpop.f32.mrb[0].mxu0
        %v919 = vpop.f32.mrb[0].mxu0
        %v920 = vadd.f32 %v708, %v919
        %v921 = vpop.f32.mrb[0].mxu0
        %922 = vmatprep.mubr.bf16.mxu0 0
        %923 = vmatmul.mubr.bf16.gmra.mrb[0].mxu0 %v770
        %v924 = vpop.f32.mrb[0].mxu0
        %v925 = vadd.f32 %v713, %v924
        %v926 = vpop.f32.mrb[0].mxu0
        %v927 = vpop.f32.mrb[0].mxu0
        %v928 = vadd.f32 %v716, %v927
        %v929 = vpop.f32.mrb[0].mxu0
        %930 = vmatprep.mubr.bf16.mxu0 0
        %931 = vmatmul.mubr.bf16.gmra.mrb[0].mxu0 %v773
        %v932 = vpop.f32.mrb[0].mxu0
        %v933 = vadd.f32 %v721, %v932
        %v934 = vpop.f32.mrb[0].mxu0
        %v935 = vpop.f32.mrb[0].mxu0
        %v936 = vadd.f32 %v724, %v935
        %v937 = vpop.f32.mrb[0].mxu0
        %938 = vdwg.mxu0
        %vm939 = vcmask 1045504
        %v940 = vrot.slane %v263, 2
        %v941 = vrot.slane %v264, 2
        %v942 = vsel %vm939, %v940, %v941
        %v943 = vrot.slane %v265, 2
        %v944 = vsel %vm939, %v941, %v943
        %v945 = vrot.slane %v266, 2
        %v946 = vrot.slane %v267, 2
        %v947 = vsel %vm939, %v945, %v946
        %v948 = vrot.slane %v268, 2
        %v949 = vsel %vm939, %v946, %v948
        %v950 = vrot.slane %v269, 2
        %v951 = vrot.slane %v270, 2
        %v952 = vsel %vm939, %v950, %v951
        %v953 = vrot.slane %v271, 2
        %v954 = vsel %vm939, %v951, %v953
        %v955 = vrot.slane %v272, 2
        %v956 = vrot.slane %v273, 2
        %v957 = vsel %vm939, %v955, %v956
        %v958 = vrot.slane %v274, 2
        %v959 = vsel %vm939, %v956, %v958
        %v960 = vrot.slane %v275, 2
        %v961 = vrot.slane %v276, 2
        %v962 = vsel %vm939, %v960, %v961
        %v963 = vrot.slane %v277, 2
        %v964 = vsel %vm939, %v961, %v963
        %v965 = vrot.slane %v278, 2
        %v966 = vrot.slane %v279, 2
        %v967 = vsel %vm939, %v965, %v966
        %v968 = vrot.slane %v280, 2
        %v969 = vsel %vm939, %v966, %v968
        %v970 = vrot.slane %v281, 2
        %v971 = vrot.slane %v282, 2
        %v972 = vsel %vm939, %v970, %v971
        %v973 = vrot.slane %v283, 2
        %v974 = vsel %vm939, %v971, %v973
        %v975 = vrot.slane %v284, 2
        %v976 = vrot.slane %v285, 2
        %v977 = vsel %vm939, %v975, %v976
        %v978 = vrot.slane %v286, 2
        %v979 = vsel %vm939, %v976, %v978
        %v980 = vrot.slane %v287, 2
        %v981 = vrot.slane %v288, 2
        %v982 = vsel %vm939, %v980, %v981
        %v983 = vrot.slane %v289, 2
        %v984 = vsel %vm939, %v981, %v983
        %v985 = vrot.slane %v290, 2
        %v986 = vrot.slane %v291, 2
        %v987 = vsel %vm939, %v985, %v986
        %v988 = vrot.slane %v292, 2
        %v989 = vsel %vm939, %v986, %v988
        %v990 = vrot.slane %v293, 2
        %v991 = vrot.slane %v294, 2
        %v992 = vsel %vm939, %v990, %v991
        %v993 = vrot.slane %v295, 2
        %v994 = vsel %vm939, %v991, %v993
        %v995 = vrot.slane %v296, 2
        %v996 = vrot.slane %v297, 2
        %v997 = vsel %vm939, %v995, %v996
        %v998 = vrot.slane %v298, 2
        %v999 = vsel %vm939, %v996, %v998
        %v1000 = vrot.slane %v299, 2
        %v1001 = vrot.slane %v300, 2
        %v1002 = vsel %vm939, %v1000, %v1001
        %v1003 = vrot.slane %v301, 2
        %v1004 = vsel %vm939, %v1001, %v1003
        %v1005 = vrot.slane %v302, 2
        %v1006 = vrot.slane %v303, 2
        %v1007 = vsel %vm939, %v1005, %v1006
        %v1008 = vrot.slane %v304, 2
        %v1009 = vsel %vm939, %v1006, %v1008
        %v1010 = vrot.slane %v305, 2
        %v1011 = vrot.slane %v306, 2
        %v1012 = vsel %vm939, %v1010, %v1011
        %v1013 = vrot.slane %v307, 2
        %v1014 = vsel %vm939, %v1011, %v1013
        %v1015 = vrot.slane %v308, 2
        %v1016 = vrot.slane %v309, 2
        %v1017 = vsel %vm939, %v1015, %v1016
        %v1018 = vrot.slane %v310, 2
        %v1019 = vsel %vm939, %v1016, %v1018
        %v1052 = vpack.c.bf16 %v944, %v942
        %v1053 = vpack.c.bf16 %v949, %v947
        %v1054 = vpack.c.bf16 %v954, %v952
        %v1055 = vpack.c.bf16 %v959, %v957
        %v1056 = vpack.c.bf16 %v964, %v962
        %v1057 = vpack.c.bf16 %v969, %v967
        %v1058 = vpack.c.bf16 %v974, %v972
        %v1059 = vpack.c.bf16 %v979, %v977
        %v1060 = vpack.c.bf16 %v984, %v982
        %v1061 = vpack.c.bf16 %v989, %v987
        %v1062 = vpack.c.bf16 %v994, %v992
        %v1063 = vpack.c.bf16 %v999, %v997
        %v1064 = vpack.c.bf16 %v1004, %v1002
        %v1065 = vpack.c.bf16 %v1009, %v1007
        %v1066 = vpack.c.bf16 %v1014, %v1012
        %v1067 = vpack.c.bf16 %v1019, %v1017
        %s1068 = scalar_lea.vmem %s1, 4
        %v1069 = vld [vmem:[%s1068] sm:$0x3]
        %v1071 = vsel %vm513, %v1052, 0
        %v1074 = vsel %vm513, %v1053, 0
        %v1077 = vsel %vm513, %v1054, 0
        %v1080 = vsel %vm513, %v1055, 0
        %v1083 = vsel %vm513, %v1056, 0
        %v1086 = vsel %vm513, %v1057, 0
        %v1089 = vsel %vm513, %v1058, 0
        %v1092 = vsel %vm513, %v1059, 0
        %v1095 = vsel %vm513, %v1060, 0
        %v1098 = vsel %vm513, %v1061, 0
        %v1101 = vsel %vm513, %v1062, 0
        %v1104 = vsel %vm513, %v1063, 0
        %v1107 = vsel %vm513, %v1064, 0
        %v1110 = vsel %vm513, %v1065, 0
        %v1113 = vsel %vm513, %v1066, 0
        %v1116 = vsel %vm513, %v1067, 0
        %v1119 = vsel %vm562, %v1069, 0
        %1121 = vmatprep.subr.bf16.mxu0 0
        %1122 = vmatpush1.bf16.msra.mxu0 %v1119
        %1123 = vmatprep.subr.bf16.mxu0 0
        %1124 = vmatpush1.bf16.msra.mxu0 0
        %1125 = vmatprep.subr.bf16.mxu0 0
        %1126 = vmatpush1.bf16.msra.mxu0 0
        %1127 = vmatprep.subr.bf16.mxu0 0
        %1128 = vmatpush1.bf16.msra.mxu0 0
        %1129 = vmatprep.subr.bf16.mxu0 0
        %1130 = vmatpush1.bf16.msra.mxu0 0
        %1131 = vmatprep.subr.bf16.mxu0 0
        %1132 = vmatpush1.bf16.msra.mxu0 0
        %1133 = vmatprep.subr.bf16.mxu0 0
        %1134 = vmatpush1.bf16.msra.mxu0 0
        %1135 = vmatprep.subr.bf16.mxu0 0
        %1136 = vmatpush1.bf16.msra.mxu0 0
        %1137 = vmatprep.subr.bf16.mxu0 0
        %1138 = vmatpush1.bf16.msra.mxu0 0
        %1139 = vmatprep.subr.bf16.mxu0 0
        %1140 = vmatpush1.bf16.msra.mxu0 0
        %1141 = vmatprep.subr.bf16.mxu0 0
        %1142 = vmatpush1.bf16.msra.mxu0 0
        %1143 = vmatprep.subr.bf16.mxu0 0
        %1144 = vmatpush1.bf16.msra.mxu0 0
        %1145 = vmatprep.subr.bf16.mxu0 0
        %1146 = vmatpush1.bf16.msra.mxu0 0
        %1147 = vmatprep.subr.bf16.mxu0 0
        %1148 = vmatpush1.bf16.msra.mxu0 0
        %1149 = vmatprep.subr.bf16.mxu0 0
        %1150 = vmatpush1.bf16.msra.mxu0 0
        %1151 = vmatprep.subr.bf16.mxu0 0
        %1152 = vmatpush1.bf16.msra.mxu0 0
        %1153 = vmatprep.mubr.bf16.mxu0 0
        %1154 = vmatmul.mubr.bf16.gmra.mrb[0].mxu0 %v1071
        %v1155 = vpop.f32.mrb[0].mxu0
        %v1156 = vadd.f32 0.0, %v1155
        %v1157 = vpop.f32.mrb[0].mxu0
        %v1158 = vpop.f32.mrb[0].mxu0
        %v1159 = vadd.f32 0.0, %v1158
        %v1160 = vpop.f32.mrb[0].mxu0
        %1161 = vmatprep.mubr.bf16.mxu0 0
        %1162 = vmatmul.mubr.bf16.gmra.mrb[0].mxu0 %v1074
        %v1163 = vpop.f32.mrb[0].mxu0
        %v1164 = vadd.f32 0.0, %v1163
        %v1165 = vpop.f32.mrb[0].mxu0
        %v1166 = vpop.f32.mrb[0].mxu0
        %v1167 = vadd.f32 0.0, %v1166
        %v1168 = vpop.f32.mrb[0].mxu0
        %1169 = vmatprep.mubr.bf16.mxu0 0
        %1170 = vmatmul.mubr.bf16.gmra.mrb[0].mxu0 %v1077
        %v1171 = vpop.f32.mrb[0].mxu0
        %v1172 = vadd.f32 0.0, %v1171
        %v1173 = vpop.f32.mrb[0].mxu0
        %v1174 = vpop.f32.mrb[0].mxu0
        %v1175 = vadd.f32 0.0, %v1174
        %v1176 = vpop.f32.mrb[0].mxu0
        %1177 = vmatprep.mubr.bf16.mxu0 0
        %1178 = vmatmul.mubr.bf16.gmra.mrb[0].mxu0 %v1080
        %v1179 = vpop.f32.mrb[0].mxu0
        %v1180 = vadd.f32 0.0, %v1179
        %v1181 = vpop.f32.mrb[0].mxu0
        %v1182 = vpop.f32.mrb[0].mxu0
        %v1183 = vadd.f32 0.0, %v1182
        %v1184 = vpop.f32.mrb[0].mxu0
        %1185 = vmatprep.mubr.bf16.mxu0 0
        %1186 = vmatmul.mubr.bf16.gmra.mrb[0].mxu0 %v1083
        %v1187 = vpop.f32.mrb[0].mxu0
        %v1188 = vadd.f32 0.0, %v1187
        %v1189 = vpop.f32.mrb[0].mxu0
        %v1190 = vpop.f32.mrb[0].mxu0
        %v1191 = vadd.f32 0.0, %v1190
        %v1192 = vpop.f32.mrb[0].mxu0
        %1193 = vmatprep.mubr.bf16.mxu0 0
        %1194 = vmatmul.mubr.bf16.gmra.mrb[0].mxu0 %v1086
        %v1195 = vpop.f32.mrb[0].mxu0
        %v1196 = vadd.f32 0.0, %v1195
        %v1197 = vpop.f32.mrb[0].mxu0
        %v1198 = vpop.f32.mrb[0].mxu0
        %v1199 = vadd.f32 0.0, %v1198
        %v1200 = vpop.f32.mrb[0].mxu0
        %1201 = vmatprep.mubr.bf16.mxu0 0
        %1202 = vmatmul.mubr.bf16.gmra.mrb[0].mxu0 %v1089
        %v1203 = vpop.f32.mrb[0].mxu0
        %v1204 = vadd.f32 0.0, %v1203
        %v1205 = vpop.f32.mrb[0].mxu0
        %v1206 = vpop.f32.mrb[0].mxu0
        %v1207 = vadd.f32 0.0, %v1206
        %v1208 = vpop.f32.mrb[0].mxu0
        %1209 = vmatprep.mubr.bf16.mxu0 0
        %1210 = vmatmul.mubr.bf16.gmra.mrb[0].mxu0 %v1092
        %v1211 = vpop.f32.mrb[0].mxu0
        %v1212 = vadd.f32 0.0, %v1211
        %v1213 = vpop.f32.mrb[0].mxu0
        %v1214 = vpop.f32.mrb[0].mxu0
        %v1215 = vadd.f32 0.0, %v1214
        %v1216 = vpop.f32.mrb[0].mxu0
        %1217 = vmatprep.mubr.bf16.mxu0 0
        %1218 = vmatmul.mubr.bf16.gmra.mrb[0].mxu0 %v1095
        %v1219 = vpop.f32.mrb[0].mxu0
        %v1220 = vadd.f32 0.0, %v1219
        %v1221 = vpop.f32.mrb[0].mxu0
        %v1222 = vpop.f32.mrb[0].mxu0
        %v1223 = vadd.f32 0.0, %v1222
        %v1224 = vpop.f32.mrb[0].mxu0
        %1225 = vmatprep.mubr.bf16.mxu0 0
        %1226 = vmatmul.mubr.bf16.gmra.mrb[0].mxu0 %v1098
        %v1227 = vpop.f32.mrb[0].mxu0
        %v1228 = vadd.f32 0.0, %v1227
        %v1229 = vpop.f32.mrb[0].mxu0
        %v1230 = vpop.f32.mrb[0].mxu0
        %v1231 = vadd.f32 0.0, %v1230
        %v1232 = vpop.f32.mrb[0].mxu0
        %1233 = vmatprep.mubr.bf16.mxu0 0
        %1234 = vmatmul.mubr.bf16.gmra.mrb[0].mxu0 %v1101
        %v1235 = vpop.f32.mrb[0].mxu0
        %v1236 = vadd.f32 0.0, %v1235
        %v1237 = vpop.f32.mrb[0].mxu0
        %v1238 = vpop.f32.mrb[0].mxu0
        %v1239 = vadd.f32 0.0, %v1238
        %v1240 = vpop.f32.mrb[0].mxu0
        %1241 = vmatprep.mubr.bf16.mxu0 0
        %1242 = vmatmul.mubr.bf16.gmra.mrb[0].mxu0 %v1104
        %v1243 = vpop.f32.mrb[0].mxu0
        %v1244 = vadd.f32 0.0, %v1243
        %v1245 = vpop.f32.mrb[0].mxu0
        %v1246 = vpop.f32.mrb[0].mxu0
        %v1247 = vadd.f32 0.0, %v1246
        %v1248 = vpop.f32.mrb[0].mxu0
        %1249 = vmatprep.mubr.bf16.mxu0 0
        %1250 = vmatmul.mubr.bf16.gmra.mrb[0].mxu0 %v1107
        %v1251 = vpop.f32.mrb[0].mxu0
        %v1252 = vadd.f32 0.0, %v1251
        %v1253 = vpop.f32.mrb[0].mxu0
        %v1254 = vpop.f32.mrb[0].mxu0
        %v1255 = vadd.f32 0.0, %v1254
        %v1256 = vpop.f32.mrb[0].mxu0
        %1257 = vmatprep.mubr.bf16.mxu0 0
        %1258 = vmatmul.mubr.bf16.gmra.mrb[0].mxu0 %v1110
        %v1259 = vpop.f32.mrb[0].mxu0
        %v1260 = vadd.f32 0.0, %v1259
        %v1261 = vpop.f32.mrb[0].mxu0
        %v1262 = vpop.f32.mrb[0].mxu0
        %v1263 = vadd.f32 0.0, %v1262
        %v1264 = vpop.f32.mrb[0].mxu0
        %1265 = vmatprep.mubr.bf16.mxu0 0
        %1266 = vmatmul.mubr.bf16.gmra.mrb[0].mxu0 %v1113
        %v1267 = vpop.f32.mrb[0].mxu0
        %v1268 = vadd.f32 0.0, %v1267
        %v1269 = vpop.f32.mrb[0].mxu0
        %v1270 = vpop.f32.mrb[0].mxu0
        %v1271 = vadd.f32 0.0, %v1270
        %v1272 = vpop.f32.mrb[0].mxu0
        %1273 = vmatprep.mubr.bf16.mxu0 0
        %1274 = vmatmul.mubr.bf16.gmra.mrb[0].mxu0 %v1116
        %v1275 = vpop.f32.mrb[0].mxu0
        %v1276 = vadd.f32 0.0, %v1275
        %v1277 = vpop.f32.mrb[0].mxu0
        %v1278 = vpop.f32.mrb[0].mxu0
        %v1279 = vadd.f32 0.0, %v1278
        %v1280 = vpop.f32.mrb[0].mxu0
        %1281 = vdwg.mxu0
        %v1282 = vadd.f32 %v813, %v1156
        %v1283 = vadd.f32 %v816, %v1159
        %v1284 = vadd.f32 %v821, %v1164
        %v1285 = vadd.f32 %v824, %v1167
        %v1286 = vadd.f32 %v829, %v1172
        %v1287 = vadd.f32 %v832, %v1175
        %v1288 = vadd.f32 %v837, %v1180
        %v1289 = vadd.f32 %v840, %v1183
        %v1290 = vadd.f32 %v845, %v1188
        %v1291 = vadd.f32 %v848, %v1191
        %v1292 = vadd.f32 %v853, %v1196
        %v1293 = vadd.f32 %v856, %v1199
        %v1294 = vadd.f32 %v861, %v1204
        %v1295 = vadd.f32 %v864, %v1207
        %v1296 = vadd.f32 %v869, %v1212
        %v1297 = vadd.f32 %v872, %v1215
        %v1298 = vadd.f32 %v877, %v1220
        %v1299 = vadd.f32 %v880, %v1223
        %v1300 = vadd.f32 %v885, %v1228
        %v1301 = vadd.f32 %v888, %v1231
        %v1302 = vadd.f32 %v893, %v1236
        %v1303 = vadd.f32 %v896, %v1239
        %v1304 = vadd.f32 %v901, %v1244
        %v1305 = vadd.f32 %v904, %v1247
        %v1306 = vadd.f32 %v909, %v1252
        %v1307 = vadd.f32 %v912, %v1255
        %v1308 = vadd.f32 %v917, %v1260
        %v1309 = vadd.f32 %v920, %v1263
        %v1310 = vadd.f32 %v925, %v1268
        %v1311 = vadd.f32 %v928, %v1271
        %v1312 = vadd.f32 %v933, %v1276
        %v1313 = vadd.f32 %v936, %v1279
        %v1314 = vpack.c.bf16 %v312, %v311
        %s1315 = scalar_lea.vmem %s1, 6
        %v1316 = vld [vmem:[%s1315] sm:$0x3]
        %v1318 = vsel %vm513, %v1314, 0
        %v1321 = vsel %vm562, %v1316, 0
        %1323 = vmatprep.subr.bf16.mxu0 0
        %1324 = vmatpush1.bf16.msra.mxu0 %v1321
        %1325 = vmatprep.subr.bf16.mxu0 0
        %1326 = vmatpush1.bf16.msra.mxu0 0
        %1327 = vmatprep.subr.bf16.mxu0 0
        %1328 = vmatpush1.bf16.msra.mxu0 0
        %1329 = vmatprep.subr.bf16.mxu0 0
        %1330 = vmatpush1.bf16.msra.mxu0 0
        %1331 = vmatprep.subr.bf16.mxu0 0
        %1332 = vmatpush1.bf16.msra.mxu0 0
        %1333 = vmatprep.subr.bf16.mxu0 0
        %1334 = vmatpush1.bf16.msra.mxu0 0
        %1335 = vmatprep.subr.bf16.mxu0 0
        %1336 = vmatpush1.bf16.msra.mxu0 0
        %1337 = vmatprep.subr.bf16.mxu0 0
        %1338 = vmatpush1.bf16.msra.mxu0 0
        %1339 = vmatprep.subr.bf16.mxu0 0
        %1340 = vmatpush1.bf16.msra.mxu0 0
        %1341 = vmatprep.subr.bf16.mxu0 0
        %1342 = vmatpush1.bf16.msra.mxu0 0
        %1343 = vmatprep.subr.bf16.mxu0 0
        %1344 = vmatpush1.bf16.msra.mxu0 0
        %1345 = vmatprep.subr.bf16.mxu0 0
        %1346 = vmatpush1.bf16.msra.mxu0 0
        %1347 = vmatprep.subr.bf16.mxu0 0
        %1348 = vmatpush1.bf16.msra.mxu0 0
        %1349 = vmatprep.subr.bf16.mxu0 0
        %1350 = vmatpush1.bf16.msra.mxu0 0
        %1351 = vmatprep.subr.bf16.mxu0 0
        %1352 = vmatpush1.bf16.msra.mxu0 0
        %1353 = vmatprep.subr.bf16.mxu0 0
        %1354 = vmatpush1.bf16.msra.mxu0 0
        %1355 = vmatprep.mubr.bf16.mxu0 0
        %1356 = vmatmul.mubr.bf16.gmra.mrb[0].mxu0 %v731
        %v1357 = vpop.f32.mrb[0].mxu0
        %v1358 = vadd.f32 0.0, %v1357
        %v1359 = vpop.f32.mrb[0].mxu0
        %v1360 = vpop.f32.mrb[0].mxu0
        %v1361 = vadd.f32 0.0, %v1360
        %v1362 = vpop.f32.mrb[0].mxu0
        %1363 = vmatprep.mubr.bf16.mxu0 0
        %1364 = vmatmul.mubr.bf16.gmra.mrb[0].mxu0 %v734
        %v1365 = vpop.f32.mrb[0].mxu0
        %v1366 = vadd.f32 0.0, %v1365
        %v1367 = vpop.f32.mrb[0].mxu0
        %v1368 = vpop.f32.mrb[0].mxu0
        %v1369 = vadd.f32 0.0, %v1368
        %v1370 = vpop.f32.mrb[0].mxu0
        %1371 = vmatprep.mubr.bf16.mxu0 0
        %1372 = vmatmul.mubr.bf16.gmra.mrb[0].mxu0 %v737
        %v1373 = vpop.f32.mrb[0].mxu0
        %v1374 = vadd.f32 0.0, %v1373
        %v1375 = vpop.f32.mrb[0].mxu0
        %v1376 = vpop.f32.mrb[0].mxu0
        %v1377 = vadd.f32 0.0, %v1376
        %v1378 = vpop.f32.mrb[0].mxu0
        %1379 = vmatprep.mubr.bf16.mxu0 0
        %1380 = vmatmul.mubr.bf16.gmra.mrb[0].mxu0 %v740
        %v1381 = vpop.f32.mrb[0].mxu0
        %v1382 = vadd.f32 0.0, %v1381
        %v1383 = vpop.f32.mrb[0].mxu0
        %v1384 = vpop.f32.mrb[0].mxu0
        %v1385 = vadd.f32 0.0, %v1384
        %v1386 = vpop.f32.mrb[0].mxu0
        %1387 = vmatprep.mubr.bf16.mxu0 0
        %1388 = vmatmul.mubr.bf16.gmra.mrb[0].mxu0 %v743
        %v1389 = vpop.f32.mrb[0].mxu0
        %v1390 = vadd.f32 0.0, %v1389
        %v1391 = vpop.f32.mrb[0].mxu0
        %v1392 = vpop.f32.mrb[0].mxu0
        %v1393 = vadd.f32 0.0, %v1392
        %v1394 = vpop.f32.mrb[0].mxu0
        %1395 = vmatprep.mubr.bf16.mxu0 0
        %1396 = vmatmul.mubr.bf16.gmra.mrb[0].mxu0 %v746
        %v1397 = vpop.f32.mrb[0].mxu0
        %v1398 = vadd.f32 0.0, %v1397
        %v1399 = vpop.f32.mrb[0].mxu0
        %v1400 = vpop.f32.mrb[0].mxu0
        %v1401 = vadd.f32 0.0, %v1400
        %v1402 = vpop.f32.mrb[0].mxu0
        %1403 = vmatprep.mubr.bf16.mxu0 0
        %1404 = vmatmul.mubr.bf16.gmra.mrb[0].mxu0 %v749
        %v1405 = vpop.f32.mrb[0].mxu0
        %v1406 = vadd.f32 0.0, %v1405
        %v1407 = vpop.f32.mrb[0].mxu0
        %v1408 = vpop.f32.mrb[0].mxu0
        %v1409 = vadd.f32 0.0, %v1408
        %v1410 = vpop.f32.mrb[0].mxu0
        %1411 = vmatprep.mubr.bf16.mxu0 0
        %1412 = vmatmul.mubr.bf16.gmra.mrb[0].mxu0 %v752
        %v1413 = vpop.f32.mrb[0].mxu0
        %v1414 = vadd.f32 0.0, %v1413
        %v1415 = vpop.f32.mrb[0].mxu0
        %v1416 = vpop.f32.mrb[0].mxu0
        %v1417 = vadd.f32 0.0, %v1416
        %v1418 = vpop.f32.mrb[0].mxu0
        %1419 = vmatprep.mubr.bf16.mxu0 0
        %1420 = vmatmul.mubr.bf16.gmra.mrb[0].mxu0 %v755
        %v1421 = vpop.f32.mrb[0].mxu0
        %v1422 = vadd.f32 0.0, %v1421
        %v1423 = vpop.f32.mrb[0].mxu0
        %v1424 = vpop.f32.mrb[0].mxu0
        %v1425 = vadd.f32 0.0, %v1424
        %v1426 = vpop.f32.mrb[0].mxu0
        %1427 = vmatprep.mubr.bf16.mxu0 0
        %1428 = vmatmul.mubr.bf16.gmra.mrb[0].mxu0 %v758
        %v1429 = vpop.f32.mrb[0].mxu0
        %v1430 = vadd.f32 0.0, %v1429
        %v1431 = vpop.f32.mrb[0].mxu0
        %v1432 = vpop.f32.mrb[0].mxu0
        %v1433 = vadd.f32 0.0, %v1432
        %v1434 = vpop.f32.mrb[0].mxu0
        %1435 = vmatprep.mubr.bf16.mxu0 0
        %1436 = vmatmul.mubr.bf16.gmra.mrb[0].mxu0 %v761
        %v1437 = vpop.f32.mrb[0].mxu0
        %v1438 = vadd.f32 0.0, %v1437
        %v1439 = vpop.f32.mrb[0].mxu0
        %v1440 = vpop.f32.mrb[0].mxu0
        %v1441 = vadd.f32 0.0, %v1440
        %v1442 = vpop.f32.mrb[0].mxu0
        %1443 = vmatprep.mubr.bf16.mxu0 0
        %1444 = vmatmul.mubr.bf16.gmra.mrb[0].mxu0 %v764
        %v1445 = vpop.f32.mrb[0].mxu0
        %v1446 = vadd.f32 0.0, %v1445
        %v1447 = vpop.f32.mrb[0].mxu0
        %v1448 = vpop.f32.mrb[0].mxu0
        %v1449 = vadd.f32 0.0, %v1448
        %v1450 = vpop.f32.mrb[0].mxu0
        %1451 = vmatprep.mubr.bf16.mxu0 0
        %1452 = vmatmul.mubr.bf16.gmra.mrb[0].mxu0 %v767
        %v1453 = vpop.f32.mrb[0].mxu0
        %v1454 = vadd.f32 0.0, %v1453
        %v1455 = vpop.f32.mrb[0].mxu0
        %v1456 = vpop.f32.mrb[0].mxu0
        %v1457 = vadd.f32 0.0, %v1456
        %v1458 = vpop.f32.mrb[0].mxu0
        %1459 = vmatprep.mubr.bf16.mxu0 0
        %1460 = vmatmul.mubr.bf16.gmra.mrb[0].mxu0 %v770
        %v1461 = vpop.f32.mrb[0].mxu0
        %v1462 = vadd.f32 0.0, %v1461
        %v1463 = vpop.f32.mrb[0].mxu0
        %v1464 = vpop.f32.mrb[0].mxu0
        %v1465 = vadd.f32 0.0, %v1464
        %v1466 = vpop.f32.mrb[0].mxu0
        %1467 = vmatprep.mubr.bf16.mxu0 0
        %1468 = vmatmul.mubr.bf16.gmra.mrb[0].mxu0 %v773
        %v1469 = vpop.f32.mrb[0].mxu0
        %v1470 = vadd.f32 0.0, %v1469
        %v1471 = vpop.f32.mrb[0].mxu0
        %v1472 = vpop.f32.mrb[0].mxu0
        %v1473 = vadd.f32 0.0, %v1472
        %v1474 = vpop.f32.mrb[0].mxu0
        %1475 = vmatprep.mubr.bf16.mxu0 0
        %1476 = vmatmul.mubr.bf16.gmra.mrb[0].mxu0 %v1318
        %v1477 = vpop.f32.mrb[0].mxu0
        %v1478 = vadd.f32 0.0, %v1477
        %v1479 = vpop.f32.mrb[0].mxu0
        %v1480 = vpop.f32.mrb[0].mxu0
        %v1481 = vadd.f32 0.0, %v1480
        %v1482 = vpop.f32.mrb[0].mxu0
        %1483 = vdwg.mxu0
        %v1484 = vadd.f32 %v1282, %v1358
        %v1485 = vadd.f32 %v1283, %v1361
        %v1486 = vadd.f32 %v1284, %v1366
        %v1487 = vadd.f32 %v1285, %v1369
        %v1488 = vadd.f32 %v1286, %v1374
        %v1489 = vadd.f32 %v1287, %v1377
        %v1490 = vadd.f32 %v1288, %v1382
        %v1491 = vadd.f32 %v1289, %v1385
        %v1492 = vadd.f32 %v1290, %v1390
        %v1493 = vadd.f32 %v1291, %v1393
        %v1494 = vadd.f32 %v1292, %v1398
        %v1495 = vadd.f32 %v1293, %v1401
        %v1496 = vadd.f32 %v1294, %v1406
        %v1497 = vadd.f32 %v1295, %v1409
        %v1498 = vadd.f32 %v1296, %v1414
        %v1499 = vadd.f32 %v1297, %v1417
        %v1500 = vadd.f32 %v1298, %v1422
        %v1501 = vadd.f32 %v1299, %v1425
        %v1502 = vadd.f32 %v1300, %v1430
        %v1503 = vadd.f32 %v1301, %v1433
        %v1504 = vadd.f32 %v1302, %v1438
        %v1505 = vadd.f32 %v1303, %v1441
        %v1506 = vadd.f32 %v1304, %v1446
        %v1507 = vadd.f32 %v1305, %v1449
        %v1508 = vadd.f32 %v1306, %v1454
        %v1509 = vadd.f32 %v1307, %v1457
        %v1510 = vadd.f32 %v1308, %v1462
        %v1511 = vadd.f32 %v1309, %v1465
        %v1512 = vadd.f32 %v1310, %v1470
        %v1513 = vadd.f32 %v1311, %v1473
        %v1514 = vadd.f32 %v1312, %v1478
        %v1515 = vadd.f32 %v1313, %v1481
        %v1519 = vrot.slane %v311, 1
        %v1520 = vrot.slane %v312, 1
        %v1521 = vsel %vm382, %v1519, %v1520
        %v1522 = vrot.slane %v313, 1
        %v1523 = vsel %vm382, %v1520, %v1522
        %v1526 = vpack.c.bf16 %v1523, %v1521
        %s1527 = scalar_lea.vmem %s1, 8
        %v1528 = vld [vmem:[%s1527] sm:$0x3]
        %v1530 = vsel %vm513, %v1526, 0
        %v1533 = vsel %vm562, %v1528, 0
        %1535 = vmatprep.subr.bf16.mxu0 0
        %1536 = vmatpush1.bf16.msra.mxu0 %v1533
        %1537 = vmatprep.subr.bf16.mxu0 0
        %1538 = vmatpush1.bf16.msra.mxu0 0
        %1539 = vmatprep.subr.bf16.mxu0 0
        %1540 = vmatpush1.bf16.msra.mxu0 0
        %1541 = vmatprep.subr.bf16.mxu0 0
        %1542 = vmatpush1.bf16.msra.mxu0 0
        %1543 = vmatprep.subr.bf16.mxu0 0
        %1544 = vmatpush1.bf16.msra.mxu0 0
        %1545 = vmatprep.subr.bf16.mxu0 0
        %1546 = vmatpush1.bf16.msra.mxu0 0
        %1547 = vmatprep.subr.bf16.mxu0 0
        %1548 = vmatpush1.bf16.msra.mxu0 0
        %1549 = vmatprep.subr.bf16.mxu0 0
        %1550 = vmatpush1.bf16.msra.mxu0 0
        %1551 = vmatprep.subr.bf16.mxu0 0
        %1552 = vmatpush1.bf16.msra.mxu0 0
        %1553 = vmatprep.subr.bf16.mxu0 0
        %1554 = vmatpush1.bf16.msra.mxu0 0
        %1555 = vmatprep.subr.bf16.mxu0 0
        %1556 = vmatpush1.bf16.msra.mxu0 0
        %1557 = vmatprep.subr.bf16.mxu0 0
        %1558 = vmatpush1.bf16.msra.mxu0 0
        %1559 = vmatprep.subr.bf16.mxu0 0
        %1560 = vmatpush1.bf16.msra.mxu0 0
        %1561 = vmatprep.subr.bf16.mxu0 0
        %1562 = vmatpush1.bf16.msra.mxu0 0
        %1563 = vmatprep.subr.bf16.mxu0 0
        %1564 = vmatpush1.bf16.msra.mxu0 0
        %1565 = vmatprep.subr.bf16.mxu0 0
        %1566 = vmatpush1.bf16.msra.mxu0 0
        %1567 = vmatprep.mubr.bf16.mxu0 0
        %1568 = vmatmul.mubr.bf16.gmra.mrb[0].mxu0 %v518
        %v1569 = vpop.f32.mrb[0].mxu0
        %v1570 = vadd.f32 0.0, %v1569
        %v1571 = vpop.f32.mrb[0].mxu0
        %v1572 = vpop.f32.mrb[0].mxu0
        %v1573 = vadd.f32 0.0, %v1572
        %v1574 = vpop.f32.mrb[0].mxu0
        %1575 = vmatprep.mubr.bf16.mxu0 0
        %1576 = vmatmul.mubr.bf16.gmra.mrb[0].mxu0 %v521
        %v1577 = vpop.f32.mrb[0].mxu0
        %v1578 = vadd.f32 0.0, %v1577
        %v1579 = vpop.f32.mrb[0].mxu0
        %v1580 = vpop.f32.mrb[0].mxu0
        %v1581 = vadd.f32 0.0, %v1580
        %v1582 = vpop.f32.mrb[0].mxu0
        %1583 = vmatprep.mubr.bf16.mxu0 0
        %1584 = vmatmul.mubr.bf16.gmra.mrb[0].mxu0 %v524
        %v1585 = vpop.f32.mrb[0].mxu0
        %v1586 = vadd.f32 0.0, %v1585
        %v1587 = vpop.f32.mrb[0].mxu0
        %v1588 = vpop.f32.mrb[0].mxu0
        %v1589 = vadd.f32 0.0, %v1588
        %v1590 = vpop.f32.mrb[0].mxu0
        %1591 = vmatprep.mubr.bf16.mxu0 0
        %1592 = vmatmul.mubr.bf16.gmra.mrb[0].mxu0 %v527
        %v1593 = vpop.f32.mrb[0].mxu0
        %v1594 = vadd.f32 0.0, %v1593
        %v1595 = vpop.f32.mrb[0].mxu0
        %v1596 = vpop.f32.mrb[0].mxu0
        %v1597 = vadd.f32 0.0, %v1596
        %v1598 = vpop.f32.mrb[0].mxu0
        %1599 = vmatprep.mubr.bf16.mxu0 0
        %1600 = vmatmul.mubr.bf16.gmra.mrb[0].mxu0 %v530
        %v1601 = vpop.f32.mrb[0].mxu0
        %v1602 = vadd.f32 0.0, %v1601
        %v1603 = vpop.f32.mrb[0].mxu0
        %v1604 = vpop.f32.mrb[0].mxu0
        %v1605 = vadd.f32 0.0, %v1604
        %v1606 = vpop.f32.mrb[0].mxu0
        %1607 = vmatprep.mubr.bf16.mxu0 0
        %1608 = vmatmul.mubr.bf16.gmra.mrb[0].mxu0 %v533
        %v1609 = vpop.f32.mrb[0].mxu0
        %v1610 = vadd.f32 0.0, %v1609
        %v1611 = vpop.f32.mrb[0].mxu0
        %v1612 = vpop.f32.mrb[0].mxu0
        %v1613 = vadd.f32 0.0, %v1612
        %v1614 = vpop.f32.mrb[0].mxu0
        %1615 = vmatprep.mubr.bf16.mxu0 0
        %1616 = vmatmul.mubr.bf16.gmra.mrb[0].mxu0 %v536
        %v1617 = vpop.f32.mrb[0].mxu0
        %v1618 = vadd.f32 0.0, %v1617
        %v1619 = vpop.f32.mrb[0].mxu0
        %v1620 = vpop.f32.mrb[0].mxu0
        %v1621 = vadd.f32 0.0, %v1620
        %v1622 = vpop.f32.mrb[0].mxu0
        %1623 = vmatprep.mubr.bf16.mxu0 0
        %1624 = vmatmul.mubr.bf16.gmra.mrb[0].mxu0 %v539
        %v1625 = vpop.f32.mrb[0].mxu0
        %v1626 = vadd.f32 0.0, %v1625
        %v1627 = vpop.f32.mrb[0].mxu0
        %v1628 = vpop.f32.mrb[0].mxu0
        %v1629 = vadd.f32 0.0, %v1628
        %v1630 = vpop.f32.mrb[0].mxu0
        %1631 = vmatprep.mubr.bf16.mxu0 0
        %1632 = vmatmul.mubr.bf16.gmra.mrb[0].mxu0 %v542
        %v1633 = vpop.f32.mrb[0].mxu0
        %v1634 = vadd.f32 0.0, %v1633
        %v1635 = vpop.f32.mrb[0].mxu0
        %v1636 = vpop.f32.mrb[0].mxu0
        %v1637 = vadd.f32 0.0, %v1636
        %v1638 = vpop.f32.mrb[0].mxu0
        %1639 = vmatprep.mubr.bf16.mxu0 0
        %1640 = vmatmul.mubr.bf16.gmra.mrb[0].mxu0 %v545
        %v1641 = vpop.f32.mrb[0].mxu0
        %v1642 = vadd.f32 0.0, %v1641
        %v1643 = vpop.f32.mrb[0].mxu0
        %v1644 = vpop.f32.mrb[0].mxu0
        %v1645 = vadd.f32 0.0, %v1644
        %v1646 = vpop.f32.mrb[0].mxu0
        %1647 = vmatprep.mubr.bf16.mxu0 0
        %1648 = vmatmul.mubr.bf16.gmra.mrb[0].mxu0 %v548
        %v1649 = vpop.f32.mrb[0].mxu0
        %v1650 = vadd.f32 0.0, %v1649
        %v1651 = vpop.f32.mrb[0].mxu0
        %v1652 = vpop.f32.mrb[0].mxu0
        %v1653 = vadd.f32 0.0, %v1652
        %v1654 = vpop.f32.mrb[0].mxu0
        %1655 = vmatprep.mubr.bf16.mxu0 0
        %1656 = vmatmul.mubr.bf16.gmra.mrb[0].mxu0 %v551
        %v1657 = vpop.f32.mrb[0].mxu0
        %v1658 = vadd.f32 0.0, %v1657
        %v1659 = vpop.f32.mrb[0].mxu0
        %v1660 = vpop.f32.mrb[0].mxu0
        %v1661 = vadd.f32 0.0, %v1660
        %v1662 = vpop.f32.mrb[0].mxu0
        %1663 = vmatprep.mubr.bf16.mxu0 0
        %1664 = vmatmul.mubr.bf16.gmra.mrb[0].mxu0 %v554
        %v1665 = vpop.f32.mrb[0].mxu0
        %v1666 = vadd.f32 0.0, %v1665
        %v1667 = vpop.f32.mrb[0].mxu0
        %v1668 = vpop.f32.mrb[0].mxu0
        %v1669 = vadd.f32 0.0, %v1668
        %v1670 = vpop.f32.mrb[0].mxu0
        %1671 = vmatprep.mubr.bf16.mxu0 0
        %1672 = vmatmul.mubr.bf16.gmra.mrb[0].mxu0 %v557
        %v1673 = vpop.f32.mrb[0].mxu0
        %v1674 = vadd.f32 0.0, %v1673
        %v1675 = vpop.f32.mrb[0].mxu0
        %v1676 = vpop.f32.mrb[0].mxu0
        %v1677 = vadd.f32 0.0, %v1676
        %v1678 = vpop.f32.mrb[0].mxu0
        %1679 = vmatprep.mubr.bf16.mxu0 0
        %1680 = vmatmul.mubr.bf16.gmra.mrb[0].mxu0 %v560
        %v1681 = vpop.f32.mrb[0].mxu0
        %v1682 = vadd.f32 0.0, %v1681
        %v1683 = vpop.f32.mrb[0].mxu0
        %v1684 = vpop.f32.mrb[0].mxu0
        %v1685 = vadd.f32 0.0, %v1684
        %v1686 = vpop.f32.mrb[0].mxu0
        %1687 = vmatprep.mubr.bf16.mxu0 0
        %1688 = vmatmul.mubr.bf16.gmra.mrb[0].mxu0 %v1530
        %v1689 = vpop.f32.mrb[0].mxu0
        %v1690 = vadd.f32 0.0, %v1689
        %v1691 = vpop.f32.mrb[0].mxu0
        %v1692 = vpop.f32.mrb[0].mxu0
        %v1693 = vadd.f32 0.0, %v1692
        %v1694 = vpop.f32.mrb[0].mxu0
        %1695 = vdwg.mxu0
        %v1696 = vadd.f32 %v1484, %v1570
        %v1697 = vadd.f32 %v1485, %v1573
        %v1698 = vadd.f32 %v1486, %v1578
        %v1699 = vadd.f32 %v1487, %v1581
        %v1700 = vadd.f32 %v1488, %v1586
        %v1701 = vadd.f32 %v1489, %v1589
        %v1702 = vadd.f32 %v1490, %v1594
        %v1703 = vadd.f32 %v1491, %v1597
        %v1704 = vadd.f32 %v1492, %v1602
        %v1705 = vadd.f32 %v1493, %v1605
        %v1706 = vadd.f32 %v1494, %v1610
        %v1707 = vadd.f32 %v1495, %v1613
        %v1708 = vadd.f32 %v1496, %v1618
        %v1709 = vadd.f32 %v1497, %v1621
        %v1710 = vadd.f32 %v1498, %v1626
        %v1711 = vadd.f32 %v1499, %v1629
        %v1712 = vadd.f32 %v1500, %v1634
        %v1713 = vadd.f32 %v1501, %v1637
        %v1714 = vadd.f32 %v1502, %v1642
        %v1715 = vadd.f32 %v1503, %v1645
        %v1716 = vadd.f32 %v1504, %v1650
        %v1717 = vadd.f32 %v1505, %v1653
        %v1718 = vadd.f32 %v1506, %v1658
        %v1719 = vadd.f32 %v1507, %v1661
        %v1720 = vadd.f32 %v1508, %v1666
        %v1721 = vadd.f32 %v1509, %v1669
        %v1722 = vadd.f32 %v1510, %v1674
        %v1723 = vadd.f32 %v1511, %v1677
        %v1724 = vadd.f32 %v1512, %v1682
        %v1725 = vadd.f32 %v1513, %v1685
        %v1726 = vadd.f32 %v1514, %v1690
        %v1727 = vadd.f32 %v1515, %v1693
        %v1728 = vrot.slane %v311, 2
        %v1729 = vrot.slane %v312, 2
        %v1730 = vsel %vm939, %v1728, %v1729
        %v1731 = vrot.slane %v313, 2
        %v1732 = vsel %vm939, %v1729, %v1731
        %v1735 = vpack.c.bf16 %v1732, %v1730
        %s1736 = scalar_lea.vmem %s1, 10
        %v1737 = vld [vmem:[%s1736] sm:$0x3]
        %v1739 = vsel %vm513, %v1735, 0
        %v1742 = vsel %vm562, %v1737, 0
        %1744 = vmatprep.subr.bf16.mxu0 0
        %1745 = vmatpush1.bf16.msra.mxu0 %v1742
        %1746 = vmatprep.subr.bf16.mxu0 0
        %1747 = vmatpush1.bf16.msra.mxu0 0
        %1748 = vmatprep.subr.bf16.mxu0 0
        %1749 = vmatpush1.bf16.msra.mxu0 0
        %1750 = vmatprep.subr.bf16.mxu0 0
        %1751 = vmatpush1.bf16.msra.mxu0 0
        %1752 = vmatprep.subr.bf16.mxu0 0
        %1753 = vmatpush1.bf16.msra.mxu0 0
        %1754 = vmatprep.subr.bf16.mxu0 0
        %1755 = vmatpush1.bf16.msra.mxu0 0
        %1756 = vmatprep.subr.bf16.mxu0 0
        %1757 = vmatpush1.bf16.msra.mxu0 0
        %1758 = vmatprep.subr.bf16.mxu0 0
        %1759 = vmatpush1.bf16.msra.mxu0 0
        %1760 = vmatprep.subr.bf16.mxu0 0
        %1761 = vmatpush1.bf16.msra.mxu0 0
        %1762 = vmatprep.subr.bf16.mxu0 0
        %1763 = vmatpush1.bf16.msra.mxu0 0
        %1764 = vmatprep.subr.bf16.mxu0 0
        %1765 = vmatpush1.bf16.msra.mxu0 0
        %1766 = vmatprep.subr.bf16.mxu0 0
        %1767 = vmatpush1.bf16.msra.mxu0 0
        %1768 = vmatprep.subr.bf16.mxu0 0
        %1769 = vmatpush1.bf16.msra.mxu0 0
        %1770 = vmatprep.subr.bf16.mxu0 0
        %1771 = vmatpush1.bf16.msra.mxu0 0
        %1772 = vmatprep.subr.bf16.mxu0 0
        %1773 = vmatpush1.bf16.msra.mxu0 0
        %1774 = vmatprep.subr.bf16.mxu0 0
        %1775 = vmatpush1.bf16.msra.mxu0 0
        %1776 = vmatprep.mubr.bf16.mxu0 0
        %1777 = vmatmul.mubr.bf16.gmra.mrb[0].mxu0 %v1074
        %v1778 = vpop.f32.mrb[0].mxu0
        %v1779 = vadd.f32 0.0, %v1778
        %v1780 = vpop.f32.mrb[0].mxu0
        %v1781 = vpop.f32.mrb[0].mxu0
        %v1782 = vadd.f32 0.0, %v1781
        %v1783 = vpop.f32.mrb[0].mxu0
        %1784 = vmatprep.mubr.bf16.mxu0 0
        %1785 = vmatmul.mubr.bf16.gmra.mrb[0].mxu0 %v1077
        %v1786 = vpop.f32.mrb[0].mxu0
        %v1787 = vadd.f32 0.0, %v1786
        %v1788 = vpop.f32.mrb[0].mxu0
        %v1789 = vpop.f32.mrb[0].mxu0
        %v1790 = vadd.f32 0.0, %v1789
        %v1791 = vpop.f32.mrb[0].mxu0
        %1792 = vmatprep.mubr.bf16.mxu0 0
        %1793 = vmatmul.mubr.bf16.gmra.mrb[0].mxu0 %v1080
        %v1794 = vpop.f32.mrb[0].mxu0
        %v1795 = vadd.f32 0.0, %v1794
        %v1796 = vpop.f32.mrb[0].mxu0
        %v1797 = vpop.f32.mrb[0].mxu0
        %v1798 = vadd.f32 0.0, %v1797
        %v1799 = vpop.f32.mrb[0].mxu0
        %1800 = vmatprep.mubr.bf16.mxu0 0
        %1801 = vmatmul.mubr.bf16.gmra.mrb[0].mxu0 %v1083
        %v1802 = vpop.f32.mrb[0].mxu0
        %v1803 = vadd.f32 0.0, %v1802
        %v1804 = vpop.f32.mrb[0].mxu0
        %v1805 = vpop.f32.mrb[0].mxu0
        %v1806 = vadd.f32 0.0, %v1805
        %v1807 = vpop.f32.mrb[0].mxu0
        %1808 = vmatprep.mubr.bf16.mxu0 0
        %1809 = vmatmul.mubr.bf16.gmra.mrb[0].mxu0 %v1086
        %v1810 = vpop.f32.mrb[0].mxu0
        %v1811 = vadd.f32 0.0, %v1810
        %v1812 = vpop.f32.mrb[0].mxu0
        %v1813 = vpop.f32.mrb[0].mxu0
        %v1814 = vadd.f32 0.0, %v1813
        %v1815 = vpop.f32.mrb[0].mxu0
        %1816 = vmatprep.mubr.bf16.mxu0 0
        %1817 = vmatmul.mubr.bf16.gmra.mrb[0].mxu0 %v1089
        %v1818 = vpop.f32.mrb[0].mxu0
        %v1819 = vadd.f32 0.0, %v1818
        %v1820 = vpop.f32.mrb[0].mxu0
        %v1821 = vpop.f32.mrb[0].mxu0
        %v1822 = vadd.f32 0.0, %v1821
        %v1823 = vpop.f32.mrb[0].mxu0
        %1824 = vmatprep.mubr.bf16.mxu0 0
        %1825 = vmatmul.mubr.bf16.gmra.mrb[0].mxu0 %v1092
        %v1826 = vpop.f32.mrb[0].mxu0
        %v1827 = vadd.f32 0.0, %v1826
        %v1828 = vpop.f32.mrb[0].mxu0
        %v1829 = vpop.f32.mrb[0].mxu0
        %v1830 = vadd.f32 0.0, %v1829
        %v1831 = vpop.f32.mrb[0].mxu0
        %1832 = vmatprep.mubr.bf16.mxu0 0
        %1833 = vmatmul.mubr.bf16.gmra.mrb[0].mxu0 %v1095
        %v1834 = vpop.f32.mrb[0].mxu0
        %v1835 = vadd.f32 0.0, %v1834
        %v1836 = vpop.f32.mrb[0].mxu0
        %v1837 = vpop.f32.mrb[0].mxu0
        %v1838 = vadd.f32 0.0, %v1837
        %v1839 = vpop.f32.mrb[0].mxu0
        %1840 = vmatprep.mubr.bf16.mxu0 0
        %1841 = vmatmul.mubr.bf16.gmra.mrb[0].mxu0 %v1098
        %v1842 = vpop.f32.mrb[0].mxu0
        %v1843 = vadd.f32 0.0, %v1842
        %v1844 = vpop.f32.mrb[0].mxu0
        %v1845 = vpop.f32.mrb[0].mxu0
        %v1846 = vadd.f32 0.0, %v1845
        %v1847 = vpop.f32.mrb[0].mxu0
        %1848 = vmatprep.mubr.bf16.mxu0 0
        %1849 = vmatmul.mubr.bf16.gmra.mrb[0].mxu0 %v1101
        %v1850 = vpop.f32.mrb[0].mxu0
        %v1851 = vadd.f32 0.0, %v1850
        %v1852 = vpop.f32.mrb[0].mxu0
        %v1853 = vpop.f32.mrb[0].mxu0
        %v1854 = vadd.f32 0.0, %v1853
        %v1855 = vpop.f32.mrb[0].mxu0
        %1856 = vmatprep.mubr.bf16.mxu0 0
        %1857 = vmatmul.mubr.bf16.gmra.mrb[0].mxu0 %v1104
        %v1858 = vpop.f32.mrb[0].mxu0
        %v1859 = vadd.f32 0.0, %v1858
        %v1860 = vpop.f32.mrb[0].mxu0
        %v1861 = vpop.f32.mrb[0].mxu0
        %v1862 = vadd.f32 0.0, %v1861
        %v1863 = vpop.f32.mrb[0].mxu0
        %1864 = vmatprep.mubr.bf16.mxu0 0
        %1865 = vmatmul.mubr.bf16.gmra.mrb[0].mxu0 %v1107
        %v1866 = vpop.f32.mrb[0].mxu0
        %v1867 = vadd.f32 0.0, %v1866
        %v1868 = vpop.f32.mrb[0].mxu0
        %v1869 = vpop.f32.mrb[0].mxu0
        %v1870 = vadd.f32 0.0, %v1869
        %v1871 = vpop.f32.mrb[0].mxu0
        %1872 = vmatprep.mubr.bf16.mxu0 0
        %1873 = vmatmul.mubr.bf16.gmra.mrb[0].mxu0 %v1110
        %v1874 = vpop.f32.mrb[0].mxu0
        %v1875 = vadd.f32 0.0, %v1874
        %v1876 = vpop.f32.mrb[0].mxu0
        %v1877 = vpop.f32.mrb[0].mxu0
        %v1878 = vadd.f32 0.0, %v1877
        %v1879 = vpop.f32.mrb[0].mxu0
        %1880 = vmatprep.mubr.bf16.mxu0 0
        %1881 = vmatmul.mubr.bf16.gmra.mrb[0].mxu0 %v1113
        %v1882 = vpop.f32.mrb[0].mxu0
        %v1883 = vadd.f32 0.0, %v1882
        %v1884 = vpop.f32.mrb[0].mxu0
        %v1885 = vpop.f32.mrb[0].mxu0
        %v1886 = vadd.f32 0.0, %v1885
        %v1887 = vpop.f32.mrb[0].mxu0
        %1888 = vmatprep.mubr.bf16.mxu0 0
        %1889 = vmatmul.mubr.bf16.gmra.mrb[0].mxu0 %v1116
        %v1890 = vpop.f32.mrb[0].mxu0
        %v1891 = vadd.f32 0.0, %v1890
        %v1892 = vpop.f32.mrb[0].mxu0
        %v1893 = vpop.f32.mrb[0].mxu0
        %v1894 = vadd.f32 0.0, %v1893
        %v1895 = vpop.f32.mrb[0].mxu0
        %1896 = vmatprep.mubr.bf16.mxu0 0
        %1897 = vmatmul.mubr.bf16.gmra.mrb[0].mxu0 %v1739
        %v1898 = vpop.f32.mrb[0].mxu0
        %v1899 = vadd.f32 0.0, %v1898
        %v1900 = vpop.f32.mrb[0].mxu0
        %v1901 = vpop.f32.mrb[0].mxu0
        %v1902 = vadd.f32 0.0, %v1901
        %v1903 = vpop.f32.mrb[0].mxu0
        %1904 = vdwg.mxu0
        %v1905 = vadd.f32 %v1696, %v1779
        %v1906 = vadd.f32 %v1697, %v1782
        %v1907 = vadd.f32 %v1698, %v1787
        %v1908 = vadd.f32 %v1699, %v1790
        %v1909 = vadd.f32 %v1700, %v1795
        %v1910 = vadd.f32 %v1701, %v1798
        %v1911 = vadd.f32 %v1702, %v1803
        %v1912 = vadd.f32 %v1703, %v1806
        %v1913 = vadd.f32 %v1704, %v1811
        %v1914 = vadd.f32 %v1705, %v1814
        %v1915 = vadd.f32 %v1706, %v1819
        %v1916 = vadd.f32 %v1707, %v1822
        %v1917 = vadd.f32 %v1708, %v1827
        %v1918 = vadd.f32 %v1709, %v1830
        %v1919 = vadd.f32 %v1710, %v1835
        %v1920 = vadd.f32 %v1711, %v1838
        %v1921 = vadd.f32 %v1712, %v1843
        %v1922 = vadd.f32 %v1713, %v1846
        %v1923 = vadd.f32 %v1714, %v1851
        %v1924 = vadd.f32 %v1715, %v1854
        %v1925 = vadd.f32 %v1716, %v1859
        %v1926 = vadd.f32 %v1717, %v1862
        %v1927 = vadd.f32 %v1718, %v1867
        %v1928 = vadd.f32 %v1719, %v1870
        %v1929 = vadd.f32 %v1720, %v1875
        %v1930 = vadd.f32 %v1721, %v1878
        %v1931 = vadd.f32 %v1722, %v1883
        %v1932 = vadd.f32 %v1723, %v1886
        %v1933 = vadd.f32 %v1724, %v1891
        %v1934 = vadd.f32 %v1725, %v1894
        %v1935 = vadd.f32 %v1726, %v1899
        %v1936 = vadd.f32 %v1727, %v1902
        %v1937 = vpack.c.bf16 %v315, %v314
        %s1938 = scalar_lea.vmem %s1, 12
        %v1939 = vld [vmem:[%s1938] sm:$0x3]
        %v1941 = vsel %vm513, %v1937, 0
        %v1944 = vsel %vm562, %v1939, 0
        %1946 = vmatprep.subr.bf16.mxu0 0
        %1947 = vmatpush1.bf16.msra.mxu0 %v1944
        %1948 = vmatprep.subr.bf16.mxu0 0
        %1949 = vmatpush1.bf16.msra.mxu0 0
        %1950 = vmatprep.subr.bf16.mxu0 0
        %1951 = vmatpush1.bf16.msra.mxu0 0
        %1952 = vmatprep.subr.bf16.mxu0 0
        %1953 = vmatpush1.bf16.msra.mxu0 0
        %1954 = vmatprep.subr.bf16.mxu0 0
        %1955 = vmatpush1.bf16.msra.mxu0 0
        %1956 = vmatprep.subr.bf16.mxu0 0
        %1957 = vmatpush1.bf16.msra.mxu0 0
        %1958 = vmatprep.subr.bf16.mxu0 0
        %1959 = vmatpush1.bf16.msra.mxu0 0
        %1960 = vmatprep.subr.bf16.mxu0 0
        %1961 = vmatpush1.bf16.msra.mxu0 0
        %1962 = vmatprep.subr.bf16.mxu0 0
        %1963 = vmatpush1.bf16.msra.mxu0 0
        %1964 = vmatprep.subr.bf16.mxu0 0
        %1965 = vmatpush1.bf16.msra.mxu0 0
        %1966 = vmatprep.subr.bf16.mxu0 0
        %1967 = vmatpush1.bf16.msra.mxu0 0
        %1968 = vmatprep.subr.bf16.mxu0 0
        %1969 = vmatpush1.bf16.msra.mxu0 0
        %1970 = vmatprep.subr.bf16.mxu0 0
        %1971 = vmatpush1.bf16.msra.mxu0 0
        %1972 = vmatprep.subr.bf16.mxu0 0
        %1973 = vmatpush1.bf16.msra.mxu0 0
        %1974 = vmatprep.subr.bf16.mxu0 0
        %1975 = vmatpush1.bf16.msra.mxu0 0
        %1976 = vmatprep.subr.bf16.mxu0 0
        %1977 = vmatpush1.bf16.msra.mxu0 0
        %1978 = vmatprep.mubr.bf16.mxu0 0
        %1979 = vmatmul.mubr.bf16.gmra.mrb[0].mxu0 %v734
        %v1980 = vpop.f32.mrb[0].mxu0
        %v1981 = vadd.f32 0.0, %v1980
        %v1982 = vpop.f32.mrb[0].mxu0
        %v1983 = vpop.f32.mrb[0].mxu0
        %v1984 = vadd.f32 0.0, %v1983
        %v1985 = vpop.f32.mrb[0].mxu0
        %1986 = vmatprep.mubr.bf16.mxu0 0
        %1987 = vmatmul.mubr.bf16.gmra.mrb[0].mxu0 %v737
        %v1988 = vpop.f32.mrb[0].mxu0
        %v1989 = vadd.f32 0.0, %v1988
        %v1990 = vpop.f32.mrb[0].mxu0
        %v1991 = vpop.f32.mrb[0].mxu0
        %v1992 = vadd.f32 0.0, %v1991
        %v1993 = vpop.f32.mrb[0].mxu0
        %1994 = vmatprep.mubr.bf16.mxu0 0
        %1995 = vmatmul.mubr.bf16.gmra.mrb[0].mxu0 %v740
        %v1996 = vpop.f32.mrb[0].mxu0
        %v1997 = vadd.f32 0.0, %v1996
        %v1998 = vpop.f32.mrb[0].mxu0
        %v1999 = vpop.f32.mrb[0].mxu0
        %v2000 = vadd.f32 0.0, %v1999
        %v2001 = vpop.f32.mrb[0].mxu0
        %2002 = vmatprep.mubr.bf16.mxu0 0
        %2003 = vmatmul.mubr.bf16.gmra.mrb[0].mxu0 %v743
        %v2004 = vpop.f32.mrb[0].mxu0
        %v2005 = vadd.f32 0.0, %v2004
        %v2006 = vpop.f32.mrb[0].mxu0
        %v2007 = vpop.f32.mrb[0].mxu0
        %v2008 = vadd.f32 0.0, %v2007
        %v2009 = vpop.f32.mrb[0].mxu0
        %2010 = vmatprep.mubr.bf16.mxu0 0
        %2011 = vmatmul.mubr.bf16.gmra.mrb[0].mxu0 %v746
        %v2012 = vpop.f32.mrb[0].mxu0
        %v2013 = vadd.f32 0.0, %v2012
        %v2014 = vpop.f32.mrb[0].mxu0
        %v2015 = vpop.f32.mrb[0].mxu0
        %v2016 = vadd.f32 0.0, %v2015
        %v2017 = vpop.f32.mrb[0].mxu0
        %2018 = vmatprep.mubr.bf16.mxu0 0
        %2019 = vmatmul.mubr.bf16.gmra.mrb[0].mxu0 %v749
        %v2020 = vpop.f32.mrb[0].mxu0
        %v2021 = vadd.f32 0.0, %v2020
        %v2022 = vpop.f32.mrb[0].mxu0
        %v2023 = vpop.f32.mrb[0].mxu0
        %v2024 = vadd.f32 0.0, %v2023
        %v2025 = vpop.f32.mrb[0].mxu0
        %2026 = vmatprep.mubr.bf16.mxu0 0
        %2027 = vmatmul.mubr.bf16.gmra.mrb[0].mxu0 %v752
        %v2028 = vpop.f32.mrb[0].mxu0
        %v2029 = vadd.f32 0.0, %v2028
        %v2030 = vpop.f32.mrb[0].mxu0
        %v2031 = vpop.f32.mrb[0].mxu0
        %v2032 = vadd.f32 0.0, %v2031
        %v2033 = vpop.f32.mrb[0].mxu0
        %2034 = vmatprep.mubr.bf16.mxu0 0
        %2035 = vmatmul.mubr.bf16.gmra.mrb[0].mxu0 %v755
        %v2036 = vpop.f32.mrb[0].mxu0
        %v2037 = vadd.f32 0.0, %v2036
        %v2038 = vpop.f32.mrb[0].mxu0
        %v2039 = vpop.f32.mrb[0].mxu0
        %v2040 = vadd.f32 0.0, %v2039
        %v2041 = vpop.f32.mrb[0].mxu0
        %2042 = vmatprep.mubr.bf16.mxu0 0
        %2043 = vmatmul.mubr.bf16.gmra.mrb[0].mxu0 %v758
        %v2044 = vpop.f32.mrb[0].mxu0
        %v2045 = vadd.f32 0.0, %v2044
        %v2046 = vpop.f32.mrb[0].mxu0
        %v2047 = vpop.f32.mrb[0].mxu0
        %v2048 = vadd.f32 0.0, %v2047
        %v2049 = vpop.f32.mrb[0].mxu0
        %2050 = vmatprep.mubr.bf16.mxu0 0
        %2051 = vmatmul.mubr.bf16.gmra.mrb[0].mxu0 %v761
        %v2052 = vpop.f32.mrb[0].mxu0
        %v2053 = vadd.f32 0.0, %v2052
        %v2054 = vpop.f32.mrb[0].mxu0
        %v2055 = vpop.f32.mrb[0].mxu0
        %v2056 = vadd.f32 0.0, %v2055
        %v2057 = vpop.f32.mrb[0].mxu0
        %2058 = vmatprep.mubr.bf16.mxu0 0
        %2059 = vmatmul.mubr.bf16.gmra.mrb[0].mxu0 %v764
        %v2060 = vpop.f32.mrb[0].mxu0
        %v2061 = vadd.f32 0.0, %v2060
        %v2062 = vpop.f32.mrb[0].mxu0
        %v2063 = vpop.f32.mrb[0].mxu0
        %v2064 = vadd.f32 0.0, %v2063
        %v2065 = vpop.f32.mrb[0].mxu0
        %2066 = vmatprep.mubr.bf16.mxu0 0
        %2067 = vmatmul.mubr.bf16.gmra.mrb[0].mxu0 %v767
        %v2068 = vpop.f32.mrb[0].mxu0
        %v2069 = vadd.f32 0.0, %v2068
        %v2070 = vpop.f32.mrb[0].mxu0
        %v2071 = vpop.f32.mrb[0].mxu0
        %v2072 = vadd.f32 0.0, %v2071
        %v2073 = vpop.f32.mrb[0].mxu0
        %2074 = vmatprep.mubr.bf16.mxu0 0
        %2075 = vmatmul.mubr.bf16.gmra.mrb[0].mxu0 %v770
        %v2076 = vpop.f32.mrb[0].mxu0
        %v2077 = vadd.f32 0.0, %v2076
        %v2078 = vpop.f32.mrb[0].mxu0
        %v2079 = vpop.f32.mrb[0].mxu0
        %v2080 = vadd.f32 0.0, %v2079
        %v2081 = vpop.f32.mrb[0].mxu0
        %2082 = vmatprep.mubr.bf16.mxu0 0
        %2083 = vmatmul.mubr.bf16.gmra.mrb[0].mxu0 %v773
        %v2084 = vpop.f32.mrb[0].mxu0
        %v2085 = vadd.f32 0.0, %v2084
        %v2086 = vpop.f32.mrb[0].mxu0
        %v2087 = vpop.f32.mrb[0].mxu0
        %v2088 = vadd.f32 0.0, %v2087
        %v2089 = vpop.f32.mrb[0].mxu0
        %2090 = vmatprep.mubr.bf16.mxu0 0
        %2091 = vmatmul.mubr.bf16.gmra.mrb[0].mxu0 %v1318
        %v2092 = vpop.f32.mrb[0].mxu0
        %v2093 = vadd.f32 0.0, %v2092
        %v2094 = vpop.f32.mrb[0].mxu0
        %v2095 = vpop.f32.mrb[0].mxu0
        %v2096 = vadd.f32 0.0, %v2095
        %v2097 = vpop.f32.mrb[0].mxu0
        %2098 = vmatprep.mubr.bf16.mxu0 0
        %2099 = vmatmul.mubr.bf16.gmra.mrb[0].mxu0 %v1941
        %v2100 = vpop.f32.mrb[0].mxu0
        %v2101 = vadd.f32 0.0, %v2100
        %v2102 = vpop.f32.mrb[0].mxu0
        %v2103 = vpop.f32.mrb[0].mxu0
        %v2104 = vadd.f32 0.0, %v2103
        %v2105 = vpop.f32.mrb[0].mxu0
        %2106 = vdwg.mxu0
        %v2107 = vadd.f32 %v1905, %v1981
        %v2108 = vadd.f32 %v1906, %v1984
        %v2109 = vadd.f32 %v1907, %v1989
        %v2110 = vadd.f32 %v1908, %v1992
        %v2111 = vadd.f32 %v1909, %v1997
        %v2112 = vadd.f32 %v1910, %v2000
        %v2113 = vadd.f32 %v1911, %v2005
        %v2114 = vadd.f32 %v1912, %v2008
        %v2115 = vadd.f32 %v1913, %v2013
        %v2116 = vadd.f32 %v1914, %v2016
        %v2117 = vadd.f32 %v1915, %v2021
        %v2118 = vadd.f32 %v1916, %v2024
        %v2119 = vadd.f32 %v1917, %v2029
        %v2120 = vadd.f32 %v1918, %v2032
        %v2121 = vadd.f32 %v1919, %v2037
        %v2122 = vadd.f32 %v1920, %v2040
        %v2123 = vadd.f32 %v1921, %v2045
        %v2124 = vadd.f32 %v1922, %v2048
        %v2125 = vadd.f32 %v1923, %v2053
        %v2126 = vadd.f32 %v1924, %v2056
        %v2127 = vadd.f32 %v1925, %v2061
        %v2128 = vadd.f32 %v1926, %v2064
        %v2129 = vadd.f32 %v1927, %v2069
        %v2130 = vadd.f32 %v1928, %v2072
        %v2131 = vadd.f32 %v1929, %v2077
        %v2132 = vadd.f32 %v1930, %v2080
        %v2133 = vadd.f32 %v1931, %v2085
        %v2134 = vadd.f32 %v1932, %v2088
        %v2135 = vadd.f32 %v1933, %v2093
        %v2136 = vadd.f32 %v1934, %v2096
        %v2137 = vadd.f32 %v1935, %v2101
        %v2138 = vadd.f32 %v1936, %v2104
        %v2142 = vrot.slane %v314, 1
        %v2143 = vrot.slane %v315, 1
        %v2144 = vsel %vm382, %v2142, %v2143
        %v2145 = vrot.slane %v316, 1
        %v2146 = vsel %vm382, %v2143, %v2145
        %v2149 = vpack.c.bf16 %v2146, %v2144
        %s2150 = scalar_lea.vmem %s1, 14
        %v2151 = vld [vmem:[%s2150] sm:$0x3]
        %v2153 = vsel %vm513, %v2149, 0
        %v2156 = vsel %vm562, %v2151, 0
        %2158 = vmatprep.subr.bf16.mxu0 0
        %2159 = vmatpush1.bf16.msra.mxu0 %v2156
        %2160 = vmatprep.subr.bf16.mxu0 0
        %2161 = vmatpush1.bf16.msra.mxu0 0
        %2162 = vmatprep.subr.bf16.mxu0 0
        %2163 = vmatpush1.bf16.msra.mxu0 0
        %2164 = vmatprep.subr.bf16.mxu0 0
        %2165 = vmatpush1.bf16.msra.mxu0 0
        %2166 = vmatprep.subr.bf16.mxu0 0
        %2167 = vmatpush1.bf16.msra.mxu0 0
        %2168 = vmatprep.subr.bf16.mxu0 0
        %2169 = vmatpush1.bf16.msra.mxu0 0
        %2170 = vmatprep.subr.bf16.mxu0 0
        %2171 = vmatpush1.bf16.msra.mxu0 0
        %2172 = vmatprep.subr.bf16.mxu0 0
        %2173 = vmatpush1.bf16.msra.mxu0 0
        %2174 = vmatprep.subr.bf16.mxu0 0
        %2175 = vmatpush1.bf16.msra.mxu0 0
        %2176 = vmatprep.subr.bf16.mxu0 0
        %2177 = vmatpush1.bf16.msra.mxu0 0
        %2178 = vmatprep.subr.bf16.mxu0 0
        %2179 = vmatpush1.bf16.msra.mxu0 0
        %2180 = vmatprep.subr.bf16.mxu0 0
        %2181 = vmatpush1.bf16.msra.mxu0 0
        %2182 = vmatprep.subr.bf16.mxu0 0
        %2183 = vmatpush1.bf16.msra.mxu0 0
        %2184 = vmatprep.subr.bf16.mxu0 0
        %2185 = vmatpush1.bf16.msra.mxu0 0
        %2186 = vmatprep.subr.bf16.mxu0 0
        %2187 = vmatpush1.bf16.msra.mxu0 0
        %2188 = vmatprep.subr.bf16.mxu0 0
        %2189 = vmatpush1.bf16.msra.mxu0 0
        %2190 = vmatprep.mubr.bf16.mxu0 0
        %2191 = vmatmul.mubr.bf16.gmra.mrb[0].mxu0 %v521
        %v2192 = vpop.f32.mrb[0].mxu0
        %v2193 = vadd.f32 0.0, %v2192
        %v2194 = vpop.f32.mrb[0].mxu0
        %v2195 = vpop.f32.mrb[0].mxu0
        %v2196 = vadd.f32 0.0, %v2195
        %v2197 = vpop.f32.mrb[0].mxu0
        %2198 = vmatprep.mubr.bf16.mxu0 0
        %2199 = vmatmul.mubr.bf16.gmra.mrb[0].mxu0 %v524
        %v2200 = vpop.f32.mrb[0].mxu0
        %v2201 = vadd.f32 0.0, %v2200
        %v2202 = vpop.f32.mrb[0].mxu0
        %v2203 = vpop.f32.mrb[0].mxu0
        %v2204 = vadd.f32 0.0, %v2203
        %v2205 = vpop.f32.mrb[0].mxu0
        %2206 = vmatprep.mubr.bf16.mxu0 0
        %2207 = vmatmul.mubr.bf16.gmra.mrb[0].mxu0 %v527
        %v2208 = vpop.f32.mrb[0].mxu0
        %v2209 = vadd.f32 0.0, %v2208
        %v2210 = vpop.f32.mrb[0].mxu0
        %v2211 = vpop.f32.mrb[0].mxu0
        %v2212 = vadd.f32 0.0, %v2211
        %v2213 = vpop.f32.mrb[0].mxu0
        %2214 = vmatprep.mubr.bf16.mxu0 0
        %2215 = vmatmul.mubr.bf16.gmra.mrb[0].mxu0 %v530
        %v2216 = vpop.f32.mrb[0].mxu0
        %v2217 = vadd.f32 0.0, %v2216
        %v2218 = vpop.f32.mrb[0].mxu0
        %v2219 = vpop.f32.mrb[0].mxu0
        %v2220 = vadd.f32 0.0, %v2219
        %v2221 = vpop.f32.mrb[0].mxu0
        %2222 = vmatprep.mubr.bf16.mxu0 0
        %2223 = vmatmul.mubr.bf16.gmra.mrb[0].mxu0 %v533
        %v2224 = vpop.f32.mrb[0].mxu0
        %v2225 = vadd.f32 0.0, %v2224
        %v2226 = vpop.f32.mrb[0].mxu0
        %v2227 = vpop.f32.mrb[0].mxu0
        %v2228 = vadd.f32 0.0, %v2227
        %v2229 = vpop.f32.mrb[0].mxu0
        %2230 = vmatprep.mubr.bf16.mxu0 0
        %2231 = vmatmul.mubr.bf16.gmra.mrb[0].mxu0 %v536
        %v2232 = vpop.f32.mrb[0].mxu0
        %v2233 = vadd.f32 0.0, %v2232
        %v2234 = vpop.f32.mrb[0].mxu0
        %v2235 = vpop.f32.mrb[0].mxu0
        %v2236 = vadd.f32 0.0, %v2235
        %v2237 = vpop.f32.mrb[0].mxu0
        %2238 = vmatprep.mubr.bf16.mxu0 0
        %2239 = vmatmul.mubr.bf16.gmra.mrb[0].mxu0 %v539
        %v2240 = vpop.f32.mrb[0].mxu0
        %v2241 = vadd.f32 0.0, %v2240
        %v2242 = vpop.f32.mrb[0].mxu0
        %v2243 = vpop.f32.mrb[0].mxu0
        %v2244 = vadd.f32 0.0, %v2243
        %v2245 = vpop.f32.mrb[0].mxu0
        %2246 = vmatprep.mubr.bf16.mxu0 0
        %2247 = vmatmul.mubr.bf16.gmra.mrb[0].mxu0 %v542
        %v2248 = vpop.f32.mrb[0].mxu0
        %v2249 = vadd.f32 0.0, %v2248
        %v2250 = vpop.f32.mrb[0].mxu0
        %v2251 = vpop.f32.mrb[0].mxu0
        %v2252 = vadd.f32 0.0, %v2251
        %v2253 = vpop.f32.mrb[0].mxu0
        %2254 = vmatprep.mubr.bf16.mxu0 0
        %2255 = vmatmul.mubr.bf16.gmra.mrb[0].mxu0 %v545
        %v2256 = vpop.f32.mrb[0].mxu0
        %v2257 = vadd.f32 0.0, %v2256
        %v2258 = vpop.f32.mrb[0].mxu0
        %v2259 = vpop.f32.mrb[0].mxu0
        %v2260 = vadd.f32 0.0, %v2259
        %v2261 = vpop.f32.mrb[0].mxu0
        %2262 = vmatprep.mubr.bf16.mxu0 0
        %2263 = vmatmul.mubr.bf16.gmra.mrb[0].mxu0 %v548
        %v2264 = vpop.f32.mrb[0].mxu0
        %v2265 = vadd.f32 0.0, %v2264
        %v2266 = vpop.f32.mrb[0].mxu0
        %v2267 = vpop.f32.mrb[0].mxu0
        %v2268 = vadd.f32 0.0, %v2267
        %v2269 = vpop.f32.mrb[0].mxu0
        %2270 = vmatprep.mubr.bf16.mxu0 0
        %2271 = vmatmul.mubr.bf16.gmra.mrb[0].mxu0 %v551
        %v2272 = vpop.f32.mrb[0].mxu0
        %v2273 = vadd.f32 0.0, %v2272
        %v2274 = vpop.f32.mrb[0].mxu0
        %v2275 = vpop.f32.mrb[0].mxu0
        %v2276 = vadd.f32 0.0, %v2275
        %v2277 = vpop.f32.mrb[0].mxu0
        %2278 = vmatprep.mubr.bf16.mxu0 0
        %2279 = vmatmul.mubr.bf16.gmra.mrb[0].mxu0 %v554
        %v2280 = vpop.f32.mrb[0].mxu0
        %v2281 = vadd.f32 0.0, %v2280
        %v2282 = vpop.f32.mrb[0].mxu0
        %v2283 = vpop.f32.mrb[0].mxu0
        %v2284 = vadd.f32 0.0, %v2283
        %v2285 = vpop.f32.mrb[0].mxu0
        %2286 = vmatprep.mubr.bf16.mxu0 0
        %2287 = vmatmul.mubr.bf16.gmra.mrb[0].mxu0 %v557
        %v2288 = vpop.f32.mrb[0].mxu0
        %v2289 = vadd.f32 0.0, %v2288
        %v2290 = vpop.f32.mrb[0].mxu0
        %v2291 = vpop.f32.mrb[0].mxu0
        %v2292 = vadd.f32 0.0, %v2291
        %v2293 = vpop.f32.mrb[0].mxu0
        %2294 = vmatprep.mubr.bf16.mxu0 0
        %2295 = vmatmul.mubr.bf16.gmra.mrb[0].mxu0 %v560
        %v2296 = vpop.f32.mrb[0].mxu0
        %v2297 = vadd.f32 0.0, %v2296
        %v2298 = vpop.f32.mrb[0].mxu0
        %v2299 = vpop.f32.mrb[0].mxu0
        %v2300 = vadd.f32 0.0, %v2299
        %v2301 = vpop.f32.mrb[0].mxu0
        %2302 = vmatprep.mubr.bf16.mxu0 0
        %2303 = vmatmul.mubr.bf16.gmra.mrb[0].mxu0 %v1530
        %v2304 = vpop.f32.mrb[0].mxu0
        %v2305 = vadd.f32 0.0, %v2304
        %v2306 = vpop.f32.mrb[0].mxu0
        %v2307 = vpop.f32.mrb[0].mxu0
        %v2308 = vadd.f32 0.0, %v2307
        %v2309 = vpop.f32.mrb[0].mxu0
        %2310 = vmatprep.mubr.bf16.mxu0 0
        %2311 = vmatmul.mubr.bf16.gmra.mrb[0].mxu0 %v2153
        %v2312 = vpop.f32.mrb[0].mxu0
        %v2313 = vadd.f32 0.0, %v2312
        %v2314 = vpop.f32.mrb[0].mxu0
        %v2315 = vpop.f32.mrb[0].mxu0
        %v2316 = vadd.f32 0.0, %v2315
        %v2317 = vpop.f32.mrb[0].mxu0
        %2318 = vdwg.mxu0
        %v2319 = vadd.f32 %v2107, %v2193
        %v2320 = vadd.f32 %v2108, %v2196
        %v2321 = vadd.f32 %v2109, %v2201
        %v2322 = vadd.f32 %v2110, %v2204
        %v2323 = vadd.f32 %v2111, %v2209
        %v2324 = vadd.f32 %v2112, %v2212
        %v2325 = vadd.f32 %v2113, %v2217
        %v2326 = vadd.f32 %v2114, %v2220
        %v2327 = vadd.f32 %v2115, %v2225
        %v2328 = vadd.f32 %v2116, %v2228
        %v2329 = vadd.f32 %v2117, %v2233
        %v2330 = vadd.f32 %v2118, %v2236
        %v2331 = vadd.f32 %v2119, %v2241
        %v2332 = vadd.f32 %v2120, %v2244
        %v2333 = vadd.f32 %v2121, %v2249
        %v2334 = vadd.f32 %v2122, %v2252
        %v2335 = vadd.f32 %v2123, %v2257
        %v2336 = vadd.f32 %v2124, %v2260
        %v2337 = vadd.f32 %v2125, %v2265
        %v2338 = vadd.f32 %v2126, %v2268
        %v2339 = vadd.f32 %v2127, %v2273
        %v2340 = vadd.f32 %v2128, %v2276
        %v2341 = vadd.f32 %v2129, %v2281
        %v2342 = vadd.f32 %v2130, %v2284
        %v2343 = vadd.f32 %v2131, %v2289
        %v2344 = vadd.f32 %v2132, %v2292
        %v2345 = vadd.f32 %v2133, %v2297
        %v2346 = vadd.f32 %v2134, %v2300
        %v2347 = vadd.f32 %v2135, %v2305
        %v2348 = vadd.f32 %v2136, %v2308
        %v2349 = vadd.f32 %v2137, %v2313
        %v2350 = vadd.f32 %v2138, %v2316
        %v2351 = vrot.slane %v314, 2
        %v2352 = vrot.slane %v315, 2
        %v2353 = vsel %vm939, %v2351, %v2352
        %v2354 = vrot.slane %v316, 2
        %v2355 = vsel %vm939, %v2352, %v2354
        %v2358 = vpack.c.bf16 %v2355, %v2353
        %s2359 = scalar_lea.vmem %s1, 16
        %v2360 = vld [vmem:[%s2359] sm:$0x3]
        %v2362 = vsel %vm513, %v2358, 0
        %v2365 = vsel %vm562, %v2360, 0
        %2367 = vmatprep.subr.bf16.mxu0 0
        %2368 = vmatpush1.bf16.msra.mxu0 %v2365
        %2369 = vmatprep.subr.bf16.mxu0 0
        %2370 = vmatpush1.bf16.msra.mxu0 0
        %2371 = vmatprep.subr.bf16.mxu0 0
        %2372 = vmatpush1.bf16.msra.mxu0 0
        %2373 = vmatprep.subr.bf16.mxu0 0
        %2374 = vmatpush1.bf16.msra.mxu0 0
        %2375 = vmatprep.subr.bf16.mxu0 0
        %2376 = vmatpush1.bf16.msra.mxu0 0
        %2377 = vmatprep.subr.bf16.mxu0 0
        %2378 = vmatpush1.bf16.msra.mxu0 0
        %2379 = vmatprep.subr.bf16.mxu0 0
        %2380 = vmatpush1.bf16.msra.mxu0 0
        %2381 = vmatprep.subr.bf16.mxu0 0
        %2382 = vmatpush1.bf16.msra.mxu0 0
        %2383 = vmatprep.subr.bf16.mxu0 0
        %2384 = vmatpush1.bf16.msra.mxu0 0
        %2385 = vmatprep.subr.bf16.mxu0 0
        %2386 = vmatpush1.bf16.msra.mxu0 0
        %2387 = vmatprep.subr.bf16.mxu0 0
        %2388 = vmatpush1.bf16.msra.mxu0 0
        %2389 = vmatprep.subr.bf16.mxu0 0
        %2390 = vmatpush1.bf16.msra.mxu0 0
        %2391 = vmatprep.subr.bf16.mxu0 0
        %2392 = vmatpush1.bf16.msra.mxu0 0
        %2393 = vmatprep.subr.bf16.mxu0 0
        %2394 = vmatpush1.bf16.msra.mxu0 0
        %2395 = vmatprep.subr.bf16.mxu0 0
        %2396 = vmatpush1.bf16.msra.mxu0 0
        %2397 = vmatprep.subr.bf16.mxu0 0
        %2398 = vmatpush1.bf16.msra.mxu0 0
        %2399 = vmatprep.mubr.bf16.mxu0 0
        %2400 = vmatmul.mubr.bf16.gmra.mrb[0].mxu0 %v1077
        %v2401 = vpop.f32.mrb[0].mxu0
        %v2402 = vadd.f32 0.0, %v2401
        %v2403 = vpop.f32.mrb[0].mxu0
        %v2404 = vpop.f32.mrb[0].mxu0
        %v2405 = vadd.f32 0.0, %v2404
        %v2406 = vpop.f32.mrb[0].mxu0
        %2407 = vmatprep.mubr.bf16.mxu0 0
        %2408 = vmatmul.mubr.bf16.gmra.mrb[0].mxu0 %v1080
        %v2409 = vpop.f32.mrb[0].mxu0
        %v2410 = vadd.f32 0.0, %v2409
        %v2411 = vpop.f32.mrb[0].mxu0
        %v2412 = vpop.f32.mrb[0].mxu0
        %v2413 = vadd.f32 0.0, %v2412
        %v2414 = vpop.f32.mrb[0].mxu0
        %2415 = vmatprep.mubr.bf16.mxu0 0
        %2416 = vmatmul.mubr.bf16.gmra.mrb[0].mxu0 %v1083
        %v2417 = vpop.f32.mrb[0].mxu0
        %v2418 = vadd.f32 0.0, %v2417
        %v2419 = vpop.f32.mrb[0].mxu0
        %v2420 = vpop.f32.mrb[0].mxu0
        %v2421 = vadd.f32 0.0, %v2420
        %v2422 = vpop.f32.mrb[0].mxu0
        %2423 = vmatprep.mubr.bf16.mxu0 0
        %2424 = vmatmul.mubr.bf16.gmra.mrb[0].mxu0 %v1086
        %v2425 = vpop.f32.mrb[0].mxu0
        %v2426 = vadd.f32 0.0, %v2425
        %v2427 = vpop.f32.mrb[0].mxu0
        %v2428 = vpop.f32.mrb[0].mxu0
        %v2429 = vadd.f32 0.0, %v2428
        %v2430 = vpop.f32.mrb[0].mxu0
        %2431 = vmatprep.mubr.bf16.mxu0 0
        %2432 = vmatmul.mubr.bf16.gmra.mrb[0].mxu0 %v1089
        %v2433 = vpop.f32.mrb[0].mxu0
        %v2434 = vadd.f32 0.0, %v2433
        %v2435 = vpop.f32.mrb[0].mxu0
        %v2436 = vpop.f32.mrb[0].mxu0
        %v2437 = vadd.f32 0.0, %v2436
        %v2438 = vpop.f32.mrb[0].mxu0
        %2439 = vmatprep.mubr.bf16.mxu0 0
        %2440 = vmatmul.mubr.bf16.gmra.mrb[0].mxu0 %v1092
        %v2441 = vpop.f32.mrb[0].mxu0
        %v2442 = vadd.f32 0.0, %v2441
        %v2443 = vpop.f32.mrb[0].mxu0
        %v2444 = vpop.f32.mrb[0].mxu0
        %v2445 = vadd.f32 0.0, %v2444
        %v2446 = vpop.f32.mrb[0].mxu0
        %2447 = vmatprep.mubr.bf16.mxu0 0
        %2448 = vmatmul.mubr.bf16.gmra.mrb[0].mxu0 %v1095
        %v2449 = vpop.f32.mrb[0].mxu0
        %v2450 = vadd.f32 0.0, %v2449
        %v2451 = vpop.f32.mrb[0].mxu0
        %v2452 = vpop.f32.mrb[0].mxu0
        %v2453 = vadd.f32 0.0, %v2452
        %v2454 = vpop.f32.mrb[0].mxu0
        %2455 = vmatprep.mubr.bf16.mxu0 0
        %2456 = vmatmul.mubr.bf16.gmra.mrb[0].mxu0 %v1098
        %v2457 = vpop.f32.mrb[0].mxu0
        %v2458 = vadd.f32 0.0, %v2457
        %v2459 = vpop.f32.mrb[0].mxu0
        %v2460 = vpop.f32.mrb[0].mxu0
        %v2461 = vadd.f32 0.0, %v2460
        %v2462 = vpop.f32.mrb[0].mxu0
        %2463 = vmatprep.mubr.bf16.mxu0 0
        %2464 = vmatmul.mubr.bf16.gmra.mrb[0].mxu0 %v1101
        %v2465 = vpop.f32.mrb[0].mxu0
        %v2466 = vadd.f32 0.0, %v2465
        %v2467 = vpop.f32.mrb[0].mxu0
        %v2468 = vpop.f32.mrb[0].mxu0
        %v2469 = vadd.f32 0.0, %v2468
        %v2470 = vpop.f32.mrb[0].mxu0
        %2471 = vmatprep.mubr.bf16.mxu0 0
        %2472 = vmatmul.mubr.bf16.gmra.mrb[0].mxu0 %v1104
        %v2473 = vpop.f32.mrb[0].mxu0
        %v2474 = vadd.f32 0.0, %v2473
        %v2475 = vpop.f32.mrb[0].mxu0
        %v2476 = vpop.f32.mrb[0].mxu0
        %v2477 = vadd.f32 0.0, %v2476
        %v2478 = vpop.f32.mrb[0].mxu0
        %2479 = vmatprep.mubr.bf16.mxu0 0
        %2480 = vmatmul.mubr.bf16.gmra.mrb[0].mxu0 %v1107
        %v2481 = vpop.f32.mrb[0].mxu0
        %v2482 = vadd.f32 0.0, %v2481
        %v2483 = vpop.f32.mrb[0].mxu0
        %v2484 = vpop.f32.mrb[0].mxu0
        %v2485 = vadd.f32 0.0, %v2484
        %v2486 = vpop.f32.mrb[0].mxu0
        %2487 = vmatprep.mubr.bf16.mxu0 0
        %2488 = vmatmul.mubr.bf16.gmra.mrb[0].mxu0 %v1110
        %v2489 = vpop.f32.mrb[0].mxu0
        %v2490 = vadd.f32 0.0, %v2489
        %v2491 = vpop.f32.mrb[0].mxu0
        %v2492 = vpop.f32.mrb[0].mxu0
        %v2493 = vadd.f32 0.0, %v2492
        %v2494 = vpop.f32.mrb[0].mxu0
        %2495 = vmatprep.mubr.bf16.mxu0 0
        %2496 = vmatmul.mubr.bf16.gmra.mrb[0].mxu0 %v1113
        %v2497 = vpop.f32.mrb[0].mxu0
        %v2498 = vadd.f32 0.0, %v2497
        %v2499 = vpop.f32.mrb[0].mxu0
        %v2500 = vpop.f32.mrb[0].mxu0
        %v2501 = vadd.f32 0.0, %v2500
        %v2502 = vpop.f32.mrb[0].mxu0
        %2503 = vmatprep.mubr.bf16.mxu0 0
        %2504 = vmatmul.mubr.bf16.gmra.mrb[0].mxu0 %v1116
        %v2505 = vpop.f32.mrb[0].mxu0
        %v2506 = vadd.f32 0.0, %v2505
        %v2507 = vpop.f32.mrb[0].mxu0
        %v2508 = vpop.f32.mrb[0].mxu0
        %v2509 = vadd.f32 0.0, %v2508
        %v2510 = vpop.f32.mrb[0].mxu0
        %2511 = vmatprep.mubr.bf16.mxu0 0
        %2512 = vmatmul.mubr.bf16.gmra.mrb[0].mxu0 %v1739
        %v2513 = vpop.f32.mrb[0].mxu0
        %v2514 = vadd.f32 0.0, %v2513
        %v2515 = vpop.f32.mrb[0].mxu0
        %v2516 = vpop.f32.mrb[0].mxu0
        %v2517 = vadd.f32 0.0, %v2516
        %v2518 = vpop.f32.mrb[0].mxu0
        %2519 = vmatprep.mubr.bf16.mxu0 0
        %2520 = vmatmul.mubr.bf16.gmra.mrb[0].mxu0 %v2362
        %v2521 = vpop.f32.mrb[0].mxu0
        %v2522 = vadd.f32 0.0, %v2521
        %v2523 = vpop.f32.mrb[0].mxu0
        %v2524 = vpop.f32.mrb[0].mxu0
        %v2525 = vadd.f32 0.0, %v2524
        %v2526 = vpop.f32.mrb[0].mxu0
        %2527 = vdwg.mxu0
        %v2528 = vadd.f32 %v2319, %v2402
        %v2529 = vadd.f32 %v2320, %v2405
        %v2530 = vadd.f32 %v2321, %v2410
        %v2531 = vadd.f32 %v2322, %v2413
        %v2532 = vadd.f32 %v2323, %v2418
        %v2533 = vadd.f32 %v2324, %v2421
        %v2534 = vadd.f32 %v2325, %v2426
        %v2535 = vadd.f32 %v2326, %v2429
        %v2536 = vadd.f32 %v2327, %v2434
        %v2537 = vadd.f32 %v2328, %v2437
        %v2538 = vadd.f32 %v2329, %v2442
        %v2539 = vadd.f32 %v2330, %v2445
        %v2540 = vadd.f32 %v2331, %v2450
        %v2541 = vadd.f32 %v2332, %v2453
        %v2542 = vadd.f32 %v2333, %v2458
        %v2543 = vadd.f32 %v2334, %v2461
        %v2544 = vadd.f32 %v2335, %v2466
        %v2545 = vadd.f32 %v2336, %v2469
        %v2546 = vadd.f32 %v2337, %v2474
        %v2547 = vadd.f32 %v2338, %v2477
        %v2548 = vadd.f32 %v2339, %v2482
        %v2549 = vadd.f32 %v2340, %v2485
        %v2550 = vadd.f32 %v2341, %v2490
        %v2551 = vadd.f32 %v2342, %v2493
        %v2552 = vadd.f32 %v2343, %v2498
        %v2553 = vadd.f32 %v2344, %v2501
        %v2554 = vadd.f32 %v2345, %v2506
        %v2555 = vadd.f32 %v2346, %v2509
        %v2556 = vadd.f32 %v2347, %v2514
        %v2557 = vadd.f32 %v2348, %v2517
        %v2558 = vadd.f32 %v2349, %v2522
        %v2559 = vadd.f32 %v2350, %v2525
        %v2560 = vld [vmem:[%s2] sm:$0x1]
        %v2562 = vlaneseq
        %v2563 = vshrl.u32 %v2562, 7
        %v2564 = vsub.s32 0, %v2563
        %v2565 = vrot.slane %v2560, %v2564
        %v2567 = vadd.f32 %v2528, %v2565
        %v2568 = vadd.f32 %v2529, %v2565
        %v2569 = vadd.f32 %v2530, %v2565
        %v2570 = vadd.f32 %v2531, %v2565
        %v2571 = vadd.f32 %v2532, %v2565
        %v2572 = vadd.f32 %v2533, %v2565
        %v2573 = vadd.f32 %v2534, %v2565
        %v2574 = vadd.f32 %v2535, %v2565
        %v2575 = vadd.f32 %v2536, %v2565
        %v2576 = vadd.f32 %v2537, %v2565
        %v2577 = vadd.f32 %v2538, %v2565
        %v2578 = vadd.f32 %v2539, %v2565
        %v2579 = vadd.f32 %v2540, %v2565
        %v2580 = vadd.f32 %v2541, %v2565
        %v2581 = vadd.f32 %v2542, %v2565
        %v2582 = vadd.f32 %v2543, %v2565
        %v2583 = vadd.f32 %v2544, %v2565
        %v2584 = vadd.f32 %v2545, %v2565
        %v2585 = vadd.f32 %v2546, %v2565
        %v2586 = vadd.f32 %v2547, %v2565
        %v2587 = vadd.f32 %v2548, %v2565
        %v2588 = vadd.f32 %v2549, %v2565
        %v2589 = vadd.f32 %v2550, %v2565
        %v2590 = vadd.f32 %v2551, %v2565
        %v2591 = vadd.f32 %v2552, %v2565
        %v2592 = vadd.f32 %v2553, %v2565
        %v2593 = vadd.f32 %v2554, %v2565
        %v2594 = vadd.f32 %v2555, %v2565
        %v2595 = vadd.f32 %v2556, %v2565
        %v2596 = vadd.f32 %v2557, %v2565
        %v2597 = vadd.f32 %v2558, %v2565
        %v2598 = vadd.f32 %v2559, %v2565
        %2599 = vst [vmem:[%s194] sm:$0xff] %v2567
        %2600 = vst [vmem:[%s194 + $0x8] sm:$0xff] %v2568
        %2601 = vst [vmem:[%s194 + $0x10] sm:$0xff] %v2569
        %2602 = vst [vmem:[%s194 + $0x18] sm:$0xff] %v2570
        %2603 = vst [vmem:[%s194 + $0x20] sm:$0xff] %v2571
        %2604 = vst [vmem:[%s194 + $0x28] sm:$0xff] %v2572
        %2605 = vst [vmem:[%s194 + $0x30] sm:$0xff] %v2573
        %2606 = vst [vmem:[%s194 + $0x38] sm:$0xff] %v2574
        %2607 = vst [vmem:[%s194 + $0x40] sm:$0xff] %v2575
        %2608 = vst [vmem:[%s194 + $0x48] sm:$0xff] %v2576
        %2609 = vst [vmem:[%s194 + $0x50] sm:$0xff] %v2577
        %2610 = vst [vmem:[%s194 + $0x58] sm:$0xff] %v2578
        %2611 = vst [vmem:[%s194 + $0x60] sm:$0xff] %v2579
        %2612 = vst [vmem:[%s194 + $0x68] sm:$0xff] %v2580
        %2613 = vst [vmem:[%s194 + $0x70] sm:$0xff] %v2581
        %2614 = vst [vmem:[%s194 + $0x78] sm:$0xff] %v2582
        %2615 = vst [vmem:[%s194 + $0x80] sm:$0xff] %v2583
        %2616 = vst [vmem:[%s194 + $0x88] sm:$0xff] %v2584
        %2617 = vst [vmem:[%s194 + $0x90] sm:$0xff] %v2585
        %2618 = vst [vmem:[%s194 + $0x98] sm:$0xff] %v2586
        %2619 = vst [vmem:[%s194 + $0xa0] sm:$0xff] %v2587
        %2620 = vst [vmem:[%s194 + $0xa8] sm:$0xff] %v2588
        %2621 = vst [vmem:[%s194 + $0xb0] sm:$0xff] %v2589
        %2622 = vst [vmem:[%s194 + $0xb8] sm:$0xff] %v2590
        %2623 = vst [vmem:[%s194 + $0xc0] sm:$0xff] %v2591
        %2624 = vst [vmem:[%s194 + $0xc8] sm:$0xff] %v2592
        %2625 = vst [vmem:[%s194 + $0xd0] sm:$0xff] %v2593
        %2626 = vst [vmem:[%s194 + $0xd8] sm:$0xff] %v2594
        %2627 = vst [vmem:[%s194 + $0xe0] sm:$0xff] %v2595
        %2628 = vst [vmem:[%s194 + $0xe8] sm:$0xff] %v2596
        %2629 = vst [vmem:[%s194 + $0xf0] sm:$0xff] %v2597
        %2630 = vst [vmem:[%s194 + $0xf8] sm:$0xff] %v2598
        %v2631 = vadd.f32 %v2567, %v2568
        %v2632 = vadd.f32 %v2631, %v2569
        %v2633 = vadd.f32 %v2632, %v2570
        %v2634 = vadd.f32 %v2633, %v2571
        %v2635 = vadd.f32 %v2634, %v2572
        %v2636 = vadd.f32 %v2635, %v2573
        %v2637 = vadd.f32 %v2636, %v2574
        %v2638 = vadd.f32 %v2637, %v2575
        %v2639 = vadd.f32 %v2638, %v2576
        %v2640 = vadd.f32 %v2639, %v2577
        %v2641 = vadd.f32 %v2640, %v2578
        %v2642 = vadd.f32 %v2641, %v2579
        %v2643 = vadd.f32 %v2642, %v2580
        %v2644 = vadd.f32 %v2643, %v2581
        %v2645 = vadd.f32 %v2644, %v2582
        %v2646 = vadd.f32 %v2645, %v2583
        %v2647 = vadd.f32 %v2646, %v2584
        %v2648 = vadd.f32 %v2647, %v2585
        %v2649 = vadd.f32 %v2648, %v2586
        %v2650 = vadd.f32 %v2649, %v2587
        %v2651 = vadd.f32 %v2650, %v2588
        %v2652 = vadd.f32 %v2651, %v2589
        %v2653 = vadd.f32 %v2652, %v2590
        %v2654 = vadd.f32 %v2653, %v2591
        %v2655 = vadd.f32 %v2654, %v2592
        %v2656 = vadd.f32 %v2655, %v2593
        %v2657 = vadd.f32 %v2656, %v2594
        %v2658 = vadd.f32 %v2657, %v2595
        %v2659 = vadd.f32 %v2658, %v2596
        %v2660 = vadd.f32 %v2659, %v2597
        %v2661 = vadd.f32 %v2660, %v2598
        %v2662 = vrot.slane %v2661, 4
        %v2663 = vadd.f32 %v2661, %v2662
        %v2664 = vrot.slane %v2663, 2
        %v2665 = vadd.f32 %v2663, %v2664
        %v2666 = vrot.slane %v2665, 1
        %v2667 = vadd.f32 %v2665, %v2666
        %v2668 = vmul.f32 %v2567, %v2567
        %v2669 = vmul.f32 %v2568, %v2568
        %v2670 = vmul.f32 %v2569, %v2569
        %v2671 = vmul.f32 %v2570, %v2570
        %v2672 = vmul.f32 %v2571, %v2571
        %v2673 = vmul.f32 %v2572, %v2572
        %v2674 = vmul.f32 %v2573, %v2573
        %v2675 = vmul.f32 %v2574, %v2574
        %v2676 = vmul.f32 %v2575, %v2575
        %v2677 = vmul.f32 %v2576, %v2576
        %v2678 = vmul.f32 %v2577, %v2577
        %v2679 = vmul.f32 %v2578, %v2578
        %v2680 = vmul.f32 %v2579, %v2579
        %v2681 = vmul.f32 %v2580, %v2580
        %v2682 = vmul.f32 %v2581, %v2581
        %v2683 = vmul.f32 %v2582, %v2582
        %v2684 = vmul.f32 %v2583, %v2583
        %v2685 = vmul.f32 %v2584, %v2584
        %v2686 = vmul.f32 %v2585, %v2585
        %v2687 = vmul.f32 %v2586, %v2586
        %v2688 = vmul.f32 %v2587, %v2587
        %v2689 = vmul.f32 %v2588, %v2588
        %v2690 = vmul.f32 %v2589, %v2589
        %v2691 = vmul.f32 %v2590, %v2590
        %v2692 = vmul.f32 %v2591, %v2591
        %v2693 = vmul.f32 %v2592, %v2592
        %v2694 = vmul.f32 %v2593, %v2593
        %v2695 = vmul.f32 %v2594, %v2594
        %v2696 = vmul.f32 %v2595, %v2595
        %v2697 = vmul.f32 %v2596, %v2596
        %v2698 = vmul.f32 %v2597, %v2597
        %v2699 = vmul.f32 %v2598, %v2598
        %v2700 = vadd.f32 %v2668, %v2669
        %v2701 = vadd.f32 %v2700, %v2670
        %v2702 = vadd.f32 %v2701, %v2671
        %v2703 = vadd.f32 %v2702, %v2672
        %v2704 = vadd.f32 %v2703, %v2673
        %v2705 = vadd.f32 %v2704, %v2674
        %v2706 = vadd.f32 %v2705, %v2675
        %v2707 = vadd.f32 %v2706, %v2676
        %v2708 = vadd.f32 %v2707, %v2677
        %v2709 = vadd.f32 %v2708, %v2678
        %v2710 = vadd.f32 %v2709, %v2679
        %v2711 = vadd.f32 %v2710, %v2680
        %v2712 = vadd.f32 %v2711, %v2681
        %v2713 = vadd.f32 %v2712, %v2682
        %v2714 = vadd.f32 %v2713, %v2683
        %v2715 = vadd.f32 %v2714, %v2684
        %v2716 = vadd.f32 %v2715, %v2685
        %v2717 = vadd.f32 %v2716, %v2686
        %v2718 = vadd.f32 %v2717, %v2687
        %v2719 = vadd.f32 %v2718, %v2688
        %v2720 = vadd.f32 %v2719, %v2689
        %v2721 = vadd.f32 %v2720, %v2690
        %v2722 = vadd.f32 %v2721, %v2691
        %v2723 = vadd.f32 %v2722, %v2692
        %v2724 = vadd.f32 %v2723, %v2693
        %v2725 = vadd.f32 %v2724, %v2694
        %v2726 = vadd.f32 %v2725, %v2695
        %v2727 = vadd.f32 %v2726, %v2696
        %v2728 = vadd.f32 %v2727, %v2697
        %v2729 = vadd.f32 %v2728, %v2698
        %v2730 = vadd.f32 %v2729, %v2699
        %v2731 = vrot.slane %v2730, 4
        %v2732 = vadd.f32 %v2730, %v2731
        %v2733 = vrot.slane %v2732, 2
        %v2734 = vadd.f32 %v2732, %v2733
        %v2735 = vrot.slane %v2734, 1
        %v2736 = vadd.f32 %v2734, %v2735
        %vm2737 = vcmask 1040384
        %v2738 = vsel %vm2737, %v2667, %v2736
        %v2739 = vsel %vm562, %v2738, 0.0
        %2740 = vst [vmem:[%s201] sm:$0xff] %v2739
        %s2741 = sand.u32 %s98, 1
        %s2742 = scalar_lea.sflag [#allocation3], %s2741
        %s2743 = sand.u32 %s98, 1
        %s2744 = smul.addr %s2743, 256
        %s2745 = scalar_lea.vmem [#allocation2], %s2744
        %s2746 = sand.u32 %s124, 1
        %s2747 = scalar_lea.sflag [#allocation5], %s2746
        %s2748 = sand.u32 %s124, 1
        %s2749 = smul.addr %s2748, 8
        %s2750 = scalar_lea.vmem [#allocation4], %s2749
        // Predicated region
        $region33: #{tpu_custom_call.1} parent=31 // pred_check
          %p2751 = pneg %p108
        $region34: #{tpu_custom_call.1} parent=31 // pred_check_branch
          %2753 = sbr.rel (%p2751) target = $region36
        $region35: #{tpu_custom_call.1} parent=31 // pred_region
          %s2754 = smul.u32 32, %s22
          %s2756 = ssub.s32 4096, 4096
          %2757 = vsyncadd %s2742, %s2756
          %s2758 = smul.addr %s2754, 128
          %s2759 = scalar_lea.hbm %s3, %s2758
          %s2760 = sshll.u32 %s2745, 4
          %s2761 = int_to_ptr.vmem [resolvable:$true] %s2760
          %2766 = dma.vmem_to_hbm [thread:$0]  %s2761, 4096, %s2759, %s2742, 128, 128, 8
        $region36: #{tpu_custom_call.1} parent=31 // pred_fallthru
          _
        // Predicated region
        $region37: #{tpu_custom_call.1} parent=31 // pred_check
          %p2767 = pneg %p134
        $region38: #{tpu_custom_call.1} parent=31 // pred_check_branch
          %2769 = sbr.rel (%p2767) target = $region40
        $region39: #{tpu_custom_call.1} parent=31 // pred_region
          %s2771 = ssub.s32 128, 128
          %2772 = vsyncadd %s2747, %s2771
          %s2773 = smul.addr %s22, 128
          %s2774 = scalar_lea.hbm %s4, %s2773
          %s2776 = sshll.u32 %s2750, 4
          %s2777 = int_to_ptr.vmem [resolvable:$true] %s2776
          %2779 = dma.vmem_to_hbm [thread:$0]  %s2777, 128, %s2774, %s2747
        $region40: #{tpu_custom_call.1} parent=31 // pred_fallthru
          _
      $region32: #{tpu_custom_call.1} parent=5 // pred_fallthru
        _
      %p2780 = scmp.le.s32.totalorder 2, %s17
      // Predicated region
      $region41: #{tpu_custom_call.1} parent=5 // pred_check
        %p2781 = pneg %p2780
      $region42: #{tpu_custom_call.1} parent=5 // pred_check_branch
        %2783 = sbr.rel (%p2781) target = $region44
      $region43: #{tpu_custom_call.1} parent=5 // pred_region
        %s2784 = ssub.s32 %s17, 2
        // Predicated region
        $region45: #{tpu_custom_call.1} parent=43 // pred_check
          %p2785 = pneg %p114
        $region46: #{tpu_custom_call.1} parent=43 // pred_check_branch
          %2787 = sbr.rel (%p2785) target = $region48
        $region47: #{tpu_custom_call.1} parent=43 // pred_region
          %s2788 = sand.u32 %s99, 1
          %s2789 = scalar_lea.sflag [#allocation3], %s2788
          %s2790 = sand.u32 %s99, 1
          %s2791 = smul.addr %s2790, 256
          %s2792 = scalar_lea.vmem [#allocation2], %s2791
          %2793 = dma.done %s2789, 4096
        $region48: #{tpu_custom_call.1} parent=43 // pred_fallthru
          _
        // Predicated region
        $region49: #{tpu_custom_call.1} parent=43 // pred_check
          %p2794 = pneg %p140
        $region50: #{tpu_custom_call.1} parent=43 // pred_check_branch
          %2796 = sbr.rel (%p2794) target = $region52
        $region51: #{tpu_custom_call.1} parent=43 // pred_region
          %s2797 = sand.u32 %s125, 1
          %s2798 = scalar_lea.sflag [#allocation5], %s2797
          %s2799 = sand.u32 %s125, 1
          %s2800 = smul.addr %s2799, 8
          %s2801 = scalar_lea.vmem [#allocation4], %s2800
          %2802 = dma.done %s2798, 128
        $region52: #{tpu_custom_call.1} parent=43 // pred_fallthru
          _
      $region44: #{tpu_custom_call.1} parent=5 // pred_fallthru
        _
    $region6: #{tpu_custom_call.1} parent=1 // loop_footer
      %s21 = sadd.s32 1, %s17
    $region7: #{tpu_custom_call.1} parent=1 // loop_footer_branch
      %16 = sbr.rel target = $region3
    $region8: #{tpu_custom_call.1} parent=1 // loop_exit
      _
    %2803 = vsyncpa [#allocation3], 1
    %s2804 = scalar_lea.sflag [#allocation3], 1
    %2805 = vsyncpa %s2804, 1
    %2806 = vsyncpa [#allocation5], 1
    %s2807 = scalar_lea.sflag [#allocation5], 1
    %2808 = vsyncpa %s2807, 1

</llo_original>
